<compile_context>
chip_gen: v6e
topology: v6e:2x2x1
jax: 0.10.0
libtpu: 0.0.40
codegen_flags: <defaults>
</compile_context>

<pallas_src>
import math

import jax
import jax.numpy as jnp
from jax.experimental import pallas as pl
from jax.experimental.pallas import tpu as pltpu


def _hgnn_kernel(xcat_ref, wbd_ref, addend_ref, g_ref, o_ref):
    # H[n, bt*C + c] = sum_f x[bt, f, n] * weight[f, c]
    #                  + (cross@W3@W[in_ft:] + bias)[n, c] + (Xm@W2@W[in_ft:])[bt, c]
    h = (jnp.dot(xcat_ref[...], wbd_ref[...],
                 preferred_element_type=jnp.float32)
         + addend_ref[...])                                    # (N_pad, C_pad)

    # Row-block of G @ H; the tiny (b,t,c,n) permute happens in the wrapper.
    o_ref[...] = jnp.dot(g_ref[...], h,
                         preferred_element_type=jnp.float32).astype(o_ref.dtype)


def hgnn_conv_forward(x, G, X_meta, cross, weight, weight2, weight3, bias):
    B, T, in_ft, N = x.shape
    out_ft = weight.shape[1]
    BT = B * T
    C_total = BT * out_ft
    K_in = BT * in_ft

    # Lane/MXU-friendly padded sizes (all multiples of 128 on the lane axis,
    # multiples of 8 on the sublane axis -> unmasked vld/vst everywhere).
    def rnd(v, m):
        return ((v + m - 1) // m) * m

    N_pad = rnd(N, 128)          # 400 -> 512
    C_pad = rnd(C_total, 128)    # 96  -> 128
    K_pad = rnd(K_in, 128)       # 48  -> 128

    W1 = weight[:in_ft]          # (in_ft, out_ft)
    W2p = weight[in_ft:]         # (32,    out_ft)

    # --- Grid-invariant algebra hoisted out of the kernel (tiny matmuls) ---
    cross2d = cross.reshape(N, cross.shape[-1])                 # (N, 16)
    base = cross2d @ weight3 @ W2p + bias[None, :]              # (N, out_ft)
    meta_proj = X_meta.reshape(BT, -1) @ (weight2 @ W2p)        # (BT, out_ft)
    addend = (base[:, None, :] + meta_proj[None, :, :]).reshape(N, C_total)

    # Block-diagonal weight: one (N,K)@(K,BT*out_ft) matmul replaces BT
    # separate skinny per-cell projections.
    wbd = jnp.kron(jnp.eye(BT, dtype=weight.dtype), W1)         # (K_in, C_total)

    # x (B,T,in_ft,N) -> (N, BT*in_ft): nodes on the sublane axis; no
    # in-kernel transpose needed.
    xcat = x.reshape(BT, in_ft, N).transpose(2, 0, 1).reshape(N, K_in)

    def pad2(a, rows, cols):
        return jnp.pad(a, ((0, rows - a.shape[0]), (0, cols - a.shape[1])))

    xcat_p = pad2(xcat, N_pad, K_pad)
    wbd_p = pad2(wbd, K_pad, C_pad)
    addend_p = pad2(addend, N_pad, C_pad)
    G_p = pad2(G, N_pad, N_pad)

    # Shard the G@H output rows across 2 grid steps (2 TCs on v7x; cheap loop
    # on v5e/v6e).  Replicated operands keep the same block index across steps
    # so the pipeliner does not re-fetch them on a single core.
    n_row_blocks = 2 if (N_pad // 2) % 8 == 0 else 1
    RB = N_pad // n_row_blocks

    flops = 2 * N_pad * N_pad * C_pad + n_row_blocks * 2 * N_pad * K_pad * C_pad
    bytes_accessed = 4 * (N_pad * K_pad + K_pad * C_pad + N_pad * C_pad
                          + N_pad * N_pad + N_pad * C_pad)

    out_p = pl.pallas_call(
        _hgnn_kernel,
        out_shape=jax.ShapeDtypeStruct((N_pad, C_pad), x.dtype),
        grid=(n_row_blocks,),
        in_specs=[
            pl.BlockSpec((N_pad, K_pad), lambda i: (0, 0)),    # xcat
            pl.BlockSpec((K_pad, C_pad), lambda i: (0, 0)),    # block-diag W
            pl.BlockSpec((N_pad, C_pad), lambda i: (0, 0)),    # additive term
            pl.BlockSpec((RB, N_pad), lambda i: (i, 0)),       # G row block
        ],
        out_specs=pl.BlockSpec((RB, C_pad), lambda i: (i, 0)),
        compiler_params=pltpu.CompilerParams(
            dimension_semantics=("parallel",)),
        cost_estimate=pl.CostEstimate(
            flops=flops, transcendentals=0, bytes_accessed=bytes_accessed),
    )(xcat_p, wbd_p, addend_p, G_p)

    out = out_p[:N, :C_total].reshape(N, B, T, out_ft)
    return jnp.transpose(out, (1, 2, 3, 0))                    # (B, T, out_ft, N)


def hgnn_conv_reference(x, G, X_meta, cross, weight, weight2, weight3, bias):
    """Pure-JAX transcription of the PyTorch forward (for validation)."""
    Xm = X_meta[:, :, None, :] @ weight2                      # (B,T,1,32)
    cross_ = cross @ weight3                                  # (1,1,N,32)
    embed = cross_ + Xm                                       # (B,T,N,32)
    xc = jnp.concatenate([x, jnp.transpose(embed, (0, 1, 3, 2))], axis=2)
    h = jnp.transpose(xc, (0, 1, 3, 2)) @ weight + bias       # (B,T,N,out_ft)
    b, t, n, c = h.shape
    hr = jnp.transpose(h, (2, 0, 1, 3)).reshape(n, -1)
    out = (G @ hr).reshape(n, b, t, c)
    return jnp.transpose(out, (1, 2, 3, 0))                   # (B,T,out_ft,N)


if __name__ == "__main__":
    B, T = 2, 3
    in_ft, out_ft = 8, 16
    N = 400            # fixed by the `cross` parameter shape (1, 1, 400, 16)
    meta_dim = 33      # fixed by `weight2` shape (33, 32)

    key = jax.random.PRNGKey(0)
    keys = jax.random.split(key, 8)

    # Deterministic parameter init mirroring reset_parameters()
    stdc = 1.0 / math.sqrt(16)
    stdv = 1.0 / math.sqrt(out_ft)
    stdv2 = 1.0 / math.sqrt(32)
    stdv3 = 1.0 / math.sqrt(32)
    cross = jax.random.uniform(keys[0], (1, 1, N, 16), jnp.float32, -stdc, stdc)
    weight = jax.random.uniform(keys[1], (in_ft + 32, out_ft), jnp.float32, -stdv, stdv)
    weight2 = jax.random.uniform(keys[2], (meta_dim, 32), jnp.float32, -stdv2, stdv2)
    weight3 = jax.random.uniform(keys[3], (16, 32), jnp.float32, -stdv3, stdv3)
    bias = jax.random.uniform(keys[4], (out_ft,), jnp.float32, -stdv, stdv)

    # Example inputs
    x = jax.random.normal(keys[5], (B, T, in_ft, N), jnp.float32)
    G = jax.random.normal(keys[6], (N, N), jnp.float32) * 0.05
    X_meta = jax.random.normal(keys[7], (B, T, meta_dim), jnp.float32)

    out = hgnn_conv_forward(x, G, X_meta, cross, weight, weight2, weight3, bias)
    out = jax.block_until_ready(out)

    ref = hgnn_conv_reference(x, G, X_meta, cross, weight, weight2, weight3, bias)
    assert out.shape == (B, T, out_ft, N), out.shape
    assert jnp.allclose(out, ref, rtol=1e-4, atol=1e-4), float(
        jnp.max(jnp.abs(out - ref)))

    print("KERNEL_OK")
</pallas_src>

<mosaic_0001>
module attributes {stable_mosaic.version = 11 : i64} {
  func.func @_hgnn_kernel(%arg0: i32, %arg1: memref<512x128xf32, #tpu.memory_space<vmem>>, %arg2: memref<128x128xf32, #tpu.memory_space<vmem>>, %arg3: memref<512x128xf32, #tpu.memory_space<vmem>>, %arg4: memref<256x512xf32, #tpu.memory_space<vmem>>, %arg5: memref<256x128xf32, #tpu.memory_space<vmem>>) attributes {dimension_semantics = [#tpu.dimension_semantics<parallel>], iteration_bounds = array<i64: 2>, scalar_prefetch = 0 : i64, scratch_operands = 0 : i64, tpu.core_type = #tpu.core_type<tc>, window_params = [{pipeline_mode = #tpu.pipeline_mode<synchronous>, transform_indices = @transform_0, window_bounds = array<i64: 512, 128>}, {pipeline_mode = #tpu.pipeline_mode<synchronous>, transform_indices = @transform_1, window_bounds = array<i64: 128, 128>}, {pipeline_mode = #tpu.pipeline_mode<synchronous>, transform_indices = @transform_2, window_bounds = array<i64: 512, 128>}, {transform_indices = @transform_3, window_bounds = array<i64: 256, 512>}, {transform_indices = @transform_4, window_bounds = array<i64: 256, 128>}]} {
    %c0 = arith.constant 0 : index
    %c0_0 = arith.constant 0 : index
    %0 = vector.load %arg1[%c0, %c0_0] : memref<512x128xf32, #tpu.memory_space<vmem>>, vector<512x128xf32>
    %c0_1 = arith.constant 0 : index
    %c0_2 = arith.constant 0 : index
    %1 = vector.load %arg2[%c0_1, %c0_2] : memref<128x128xf32, #tpu.memory_space<vmem>>, vector<128x128xf32>
    %cst = arith.constant dense<0.000000e+00> : vector<512x128xf32>
    %2 = tpu.matmul %0, %1, %cst {dimension_numbers = #tpu.dot_dimension_numbers<[1], [0], [0], [1], [0, 0, 1, 1], [], []>} : vector<512x128xf32>, vector<128x128xf32>, vector<512x128xf32> -> vector<512x128xf32>
    %c0_3 = arith.constant 0 : index
    %c0_4 = arith.constant 0 : index
    %3 = vector.load %arg3[%c0_3, %c0_4] : memref<512x128xf32, #tpu.memory_space<vmem>>, vector<512x128xf32>
    %4 = arith.addf %2, %3 : vector<512x128xf32>
    %c0_5 = arith.constant 0 : index
    %c0_6 = arith.constant 0 : index
    %5 = vector.load %arg4[%c0_5, %c0_6] : memref<256x512xf32, #tpu.memory_space<vmem>>, vector<256x512xf32>
    %cst_7 = arith.constant dense<0.000000e+00> : vector<256x128xf32>
    %6 = tpu.matmul %5, %4, %cst_7 {dimension_numbers = #tpu.dot_dimension_numbers<[1], [0], [0], [1], [0, 0, 1, 1], [], []>} : vector<256x512xf32>, vector<512x128xf32>, vector<256x128xf32> -> vector<256x128xf32>
    %c0_8 = arith.constant 0 : index
    %c0_9 = arith.constant 0 : index
    %7 = vector.load %arg5[%c0_8, %c0_9] : memref<256x128xf32, #tpu.memory_space<vmem>>, vector<256x128xf32>
    tpu.vector_store %arg5[%c0_8, %c0_9], %6 {strides = array<i32>} : memref<256x128xf32, #tpu.memory_space<vmem>>, vector<256x128xf32>,
    return
  }
  func.func @transform_0(%arg0: i32) -> (i32, i32) {
    %c0_i32 = arith.constant 0 : i32
    %c0_i32_0 = arith.constant 0 : i32
    %c0_i32_1 = arith.constant 0 : i32
    return %c0_i32, %c0_i32_0 : i32, i32
  }
  func.func @transform_1(%arg0: i32) -> (i32, i32) {
    %c0_i32 = arith.constant 0 : i32
    %c0_i32_0 = arith.constant 0 : i32
    %c0_i32_1 = arith.constant 0 : i32
    return %c0_i32, %c0_i32_0 : i32, i32
  }
  func.func @transform_2(%arg0: i32) -> (i32, i32) {
    %c0_i32 = arith.constant 0 : i32
    %c0_i32_0 = arith.constant 0 : i32
    %c0_i32_1 = arith.constant 0 : i32
    return %c0_i32, %c0_i32_0 : i32, i32
  }
  func.func @transform_3(%arg0: i32) -> (i32, i32) {
    %c0_i32 = arith.constant 0 : i32
    %c0_i32_0 = arith.constant 0 : i32
    return %arg0, %c0_i32 : i32, i32
  }
  func.func @transform_4(%arg0: i32) -> (i32, i32) {
    %c0_i32 = arith.constant 0 : i32
    %c0_i32_0 = arith.constant 0 : i32
    return %arg0, %c0_i32 : i32, i32
  }
}

</mosaic_0001>

<llo_original>
// kernel: tpu_custom_call.1
$region0: #{tpu_custom_call.1}
  #allocation0 [shape = 'u32[]', space=smem, size = 0x4, offset = 0x4, fixed_abs, tag = 'smem constant byte address 0x4 - core index']
  #allocation1 [shape = 'u32[144,128]{1,0:T(1,128)}', space=vmem, size = 0x12000, scoped, tag = 'internal scratch']
  %s0 = inlined_call_operand.hbm [shape: f32[512,128], index: 0, kind: input, shape index: {}]
  %s1 = inlined_call_operand.hbm [shape: f32[128,128], index: 1, kind: input, shape index: {}]
  %s2 = inlined_call_operand.hbm [shape: f32[512,128], index: 2, kind: input, shape index: {}]
  %s3 = inlined_call_operand.hbm [shape: f32[512,512], index: 3, kind: input, shape index: {}]
  %s4 = inlined_call_operand.hbm [shape: f32[512,128], index: 4, kind: output, shape index: {}]
  %s5 = sld [smem:[#allocation0]]
  $region65: #{tpu_custom_call.1} parent=0
    _
  %s7 = ssub.s32 1, %s5
  %s8 = scalar_select 0, %s7, %s5
  $region1: #{tpu_custom_call.1} parent=0
    #allocation2 [shape = 'u8[262144]{0}', space=vmem, size = 0x40000, scoped, tag = 'input window, operand 0, single buffered']
    #allocation3 [shape = 's32[2]{0}', space=sflag, size = 0x8, scoped, tag = 'scoped memory for tpu_custom_call.1']
    #allocation4 [shape = 's32[2]{0}', space=sflag, size = 0x8, scoped, tag = 'scoped memory for tpu_custom_call.1']
    #allocation5 [shape = 'u8[65536]{0}', space=vmem, size = 0x10000, scoped, tag = 'input window, operand 1, single buffered']
    #allocation6 [shape = 's32[1]{0}', space=sflag, size = 0x4, scoped, tag = 'scoped memory for tpu_custom_call.1']
    #allocation7 [shape = 'u8[262144]{0}', space=vmem, size = 0x40000, scoped, tag = 'input window, operand 2, single buffered']
    #allocation8 [shape = 'u8[1048576]{0}', space=vmem, size = 0x100000, scoped, tag = 'input window, operand 3']
    #allocation9 [shape = 's32[2]{0}', space=sflag, size = 0x8, scoped, tag = 'scoped memory for tpu_custom_call.1']
    #allocation10 [shape = 'u8[262144]{0}', space=vmem, size = 0x40000, scoped, tag = 'output window, operand 0']
    %9 = vsyncpa [#allocation3], 0
    %10 = vsyncpa [#allocation6], 0
    %11 = vsyncpa [#allocation9], 0
    %s12 = scalar_lea.sflag [#allocation9], 1
    %13 = vsyncpa %s12, 0
    %14 = vsyncpa [#allocation4], 0
    %s15 = scalar_lea.sflag [#allocation4], 1
    %16 = vsyncpa %s15, 0
    loop: start=0, step=1, limit=4
    $region2: #{tpu_custom_call.1} parent=1 // loop_pre_header
      _
    $region3: #{tpu_custom_call.1} parent=1 // loop_header
      %s18 = sphi 0, %s22
      %p19 = scmp.ge.s32.totalorder %s18, 4
      %s26 = sphi 0, %s26
      %s28 = sphi 0, %s26
      %s29 = sphi 0, %s28
      %s43 = sphi 0, %s29
      %s47 = sphi 0, %s47
      %s49 = sphi 0, %s47
      %s50 = sphi 0, %s49
      %s64 = sphi 0, %s50
      %s68 = sphi 0, %s68
      %s70 = sphi 0, %s68
      %s71 = sphi 0, %s70
      %s85 = sphi 0, %s71
      %s91 = sphi 0, %s93
      %s94 = sphi 0, %s91
      %s95 = sphi 0, %s94
      %s111 = sphi 0, %s95
      %s117 = sphi 0, %s119
      %s120 = sphi 0, %s117
      %s121 = sphi 0, %s120
      %s137 = sphi 0, %s121
    $region4: #{tpu_custom_call.1} parent=1 // loop_header_branch
      %21 = sbr.rel (%p19) target = $region8
    $region5: #{tpu_custom_call.1} parent=1 // loop_body
      %s23 = ssub.s32 %s18, 1
      %s24 = ssub.s32 %s18, 2
      %s25 = sadd.s32 %s18, 1
      %s27 = sadd.s32 %s26, 1
      %p30 = scmp.eq.s32.totalorder %s18, 1
      %p31 = scmp.ne.s32.totalorder %s26, %s28
      %p32 = scmp.eq.s32.totalorder %s18, 0
      %p33 = por %p31, %p32
      %p34 = scmp.ne.s32.totalorder %s26, %s28
      %p35 = scmp.eq.s32.totalorder %s23, 1
      %p36 = por %p34, %p35
      %p37 = scmp.ne.s32.totalorder %s28, %s29
      %p38 = scmp.eq.s32.totalorder %s23, 0
      %p39 = por %p37, %p38
      %p40 = scmp.ne.s32.totalorder %s28, %s29
      %p41 = scmp.eq.s32.totalorder %s24, 1
      %p42 = por %p40, %p41
      %p44 = scmp.ne.s32.totalorder %s29, %s43
      %p45 = scmp.eq.s32.totalorder %s24, 0
      %p46 = por %p44, %p45
      %s48 = sadd.s32 %s47, 1
      %p51 = scmp.eq.s32.totalorder %s18, 1
      %p52 = scmp.ne.s32.totalorder %s47, %s49
      %p53 = scmp.eq.s32.totalorder %s18, 0
      %p54 = por %p52, %p53
      %p55 = scmp.ne.s32.totalorder %s47, %s49
      %p56 = scmp.eq.s32.totalorder %s23, 1
      %p57 = por %p55, %p56
      %p58 = scmp.ne.s32.totalorder %s49, %s50
      %p59 = scmp.eq.s32.totalorder %s23, 0
      %p60 = por %p58, %p59
      %p61 = scmp.ne.s32.totalorder %s49, %s50
      %p62 = scmp.eq.s32.totalorder %s24, 1
      %p63 = por %p61, %p62
      %p65 = scmp.ne.s32.totalorder %s50, %s64
      %p66 = scmp.eq.s32.totalorder %s24, 0
      %p67 = por %p65, %p66
      %s69 = sadd.s32 %s68, 1
      %p72 = scmp.eq.s32.totalorder %s18, 1
      %p73 = scmp.ne.s32.totalorder %s68, %s70
      %p74 = scmp.eq.s32.totalorder %s18, 0
      %p75 = por %p73, %p74
      %p76 = scmp.ne.s32.totalorder %s68, %s70
      %p77 = scmp.eq.s32.totalorder %s23, 1
      %p78 = por %p76, %p77
      %p79 = scmp.ne.s32.totalorder %s70, %s71
      %p80 = scmp.eq.s32.totalorder %s23, 0
      %p81 = por %p79, %p80
      %p82 = scmp.ne.s32.totalorder %s70, %s71
      %p83 = scmp.eq.s32.totalorder %s24, 1
      %p84 = por %p82, %p83
      %p86 = scmp.ne.s32.totalorder %s71, %s85
      %p87 = scmp.eq.s32.totalorder %s24, 0
      %p88 = por %p86, %p87
      %s89 = ssub.s32 %s18, %s25
      %p90 = scmp.eq.s32.totalorder %s89, 0
      %s92 = sadd.s32 %s91, 1
      %s93 = scalar_select %p90, %s91, %s92
      %p96 = pneg %p90
      %p97 = scmp.eq.s32.totalorder %s18, 1
      %p98 = por %p96, %p97
      %p99 = scmp.ne.s32.totalorder %s91, %s94
      %p100 = scmp.eq.s32.totalorder %s18, 0
      %p101 = por %p99, %p100
      %p102 = scmp.ne.s32.totalorder %s91, %s94
      %p103 = scmp.eq.s32.totalorder %s23, 1
      %p104 = por %p102, %p103
      %p105 = scmp.ne.s32.totalorder %s94, %s95
      %p106 = scmp.eq.s32.totalorder %s23, 0
      %p107 = por %p105, %p106
      %p108 = scmp.ne.s32.totalorder %s94, %s95
      %p109 = scmp.eq.s32.totalorder %s24, 1
      %p110 = por %p108, %p109
      %p112 = scmp.ne.s32.totalorder %s95, %s111
      %p113 = scmp.eq.s32.totalorder %s24, 0
      %p114 = por %p112, %p113
      %s115 = ssub.s32 %s18, %s25
      %p116 = scmp.eq.s32.totalorder %s115, 0
      %s118 = sadd.s32 %s117, 1
      %s119 = scalar_select %p116, %s117, %s118
      %p122 = pneg %p116
      %p123 = scmp.eq.s32.totalorder %s18, 1
      %p124 = por %p122, %p123
      %p125 = scmp.ne.s32.totalorder %s117, %s120
      %p126 = scmp.eq.s32.totalorder %s18, 0
      %p127 = por %p125, %p126
      %p128 = scmp.ne.s32.totalorder %s117, %s120
      %p129 = scmp.eq.s32.totalorder %s23, 1
      %p130 = por %p128, %p129
      %p131 = scmp.ne.s32.totalorder %s120, %s121
      %p132 = scmp.eq.s32.totalorder %s23, 0
      %p133 = por %p131, %p132
      %p134 = scmp.ne.s32.totalorder %s120, %s121
      %p135 = scmp.eq.s32.totalorder %s24, 1
      %p136 = por %p134, %p135
      %p138 = scmp.ne.s32.totalorder %s121, %s137
      %p139 = scmp.eq.s32.totalorder %s24, 0
      %p140 = por %p138, %p139
      %p141 = scmp.le.s32.totalorder 1, %s18
      %p142 = scmp.lt.s32.totalorder %s18, 3
      %p143 = pnand %p141, %p142
      %p144 = pneg %p143
      // Predicated region
      $region9: #{tpu_custom_call.1} parent=5 // pred_check
        _
      $region10: #{tpu_custom_call.1} parent=5 // pred_check_branch
        %146 = sbr.rel (%p143) target = $region12
      $region11: #{tpu_custom_call.1} parent=5 // pred_region
        %s147 = ssub.s32 %s18, 1
        // Predicated region
        $region13: #{tpu_custom_call.1} parent=11 // pred_check
          %p148 = pneg %p39
        $region14: #{tpu_custom_call.1} parent=11 // pred_check_branch
          %150 = sbr.rel (%p148) target = $region16
        $region15: #{tpu_custom_call.1} parent=11 // pred_region
          %s152 = ssub.s32 8192, 8192
          %153 = vsyncadd [#allocation3], %s152
          %s154 = sshll.u32 [#allocation2], 4
          %s155 = int_to_ptr.vmem [resolvable:$true] %s154
          %160 = dma.hbm_to_vmem [thread:$0]  %s0, 8192, %s155, [#allocation3], 128, 128, 8
        $region16: #{tpu_custom_call.1} parent=11 // pred_fallthru
          _
        // Predicated region
        $region17: #{tpu_custom_call.1} parent=11 // pred_check
          %p161 = pneg %p60
        $region18: #{tpu_custom_call.1} parent=11 // pred_check_branch
          %163 = sbr.rel (%p161) target = $region20
        $region19: #{tpu_custom_call.1} parent=11 // pred_region
          %s165 = ssub.s32 2048, 2048
          %166 = vsyncadd [#allocation6], %s165
          %s167 = sshll.u32 [#allocation5], 4
          %s168 = int_to_ptr.vmem [resolvable:$true] %s167
          %173 = dma.hbm_to_vmem [thread:$0]  %s1, 2048, %s168, [#allocation6], 128, 128, 8
        $region20: #{tpu_custom_call.1} parent=11 // pred_fallthru
          _
        // Predicated region
        $region21: #{tpu_custom_call.1} parent=11 // pred_check
          %p174 = pneg %p81
        $region22: #{tpu_custom_call.1} parent=11 // pred_check_branch
          %176 = sbr.rel (%p174) target = $region24
        $region23: #{tpu_custom_call.1} parent=11 // pred_region
          %s178 = ssub.s32 8192, 8192
          %179 = vsyncadd [#allocation6], %s178
          %s180 = sshll.u32 [#allocation7], 4
          %s181 = int_to_ptr.vmem [resolvable:$true] %s180
          %186 = dma.hbm_to_vmem [thread:$0]  %s2, 8192, %s181, [#allocation6], 128, 128, 8
        $region24: #{tpu_custom_call.1} parent=11 // pred_fallthru
          _
      $region12: #{tpu_custom_call.1} parent=5 // pred_fallthru
        _
      %p187 = scmp.lt.s32.totalorder %s18, 2
      // Predicated region
      $region25: #{tpu_custom_call.1} parent=5 // pred_check
        %p188 = pneg %p187
      $region26: #{tpu_custom_call.1} parent=5 // pred_check_branch
        %190 = sbr.rel (%p188) target = $region28
      $region27: #{tpu_custom_call.1} parent=5 // pred_region
        // Predicated region
        $region29: #{tpu_custom_call.1} parent=27 // pred_check
          %p191 = pneg %p101
        $region30: #{tpu_custom_call.1} parent=27 // pred_check_branch
          %193 = sbr.rel (%p191) target = $region32
        $region31: #{tpu_custom_call.1} parent=27 // pred_region
          %s194 = sand.u32 %s91, 1
          %s195 = scalar_lea.sflag [#allocation9], %s194
          %s196 = sand.u32 %s91, 1
          %s197 = smul.addr %s196, 1024
          %s198 = scalar_lea.vmem [#allocation8], %s197
          %s199 = smul.u32 32, %s18
          %s201 = ssub.s32 16384, 16384
          %202 = vsyncadd %s195, %s201
          %s203 = smul.addr %s199, 4
          %s204 = smul.addr %s203, 128
          %s205 = scalar_lea.hbm %s3, %s204
          %s206 = sshll.u32 %s198, 4
          %s207 = int_to_ptr.vmem [resolvable:$true] %s206
          %212 = dma.hbm_to_vmem [thread:$0]  %s205, 16384, %s207, %s195, 512, 512, 32
        $region32: #{tpu_custom_call.1} parent=27 // pred_fallthru
          _
      $region28: #{tpu_custom_call.1} parent=5 // pred_fallthru
        _
      %p213 = scmp.le.s32.totalorder 1, %s18
      %p214 = scmp.lt.s32.totalorder %s18, 3
      %p215 = pnand %p213, %p214
      %p216 = pneg %p215
      // Predicated region
      $region33: #{tpu_custom_call.1} parent=5 // pred_check
        _
      $region34: #{tpu_custom_call.1} parent=5 // pred_check_branch
        %218 = sbr.rel (%p215) target = $region36
      $region35: #{tpu_custom_call.1} parent=5 // pred_region
        %s219 = ssub.s32 %s18, 1
        // Predicated region
        $region37: #{tpu_custom_call.1} parent=35 // pred_check
          %p220 = pneg %p39
        $region38: #{tpu_custom_call.1} parent=35 // pred_check_branch
          %222 = sbr.rel (%p220) target = $region40
        $region39: #{tpu_custom_call.1} parent=35 // pred_region
          %223 = dma.done [#allocation3], 8192
        $region40: #{tpu_custom_call.1} parent=35 // pred_fallthru
          _
        // Predicated region
        $region41: #{tpu_custom_call.1} parent=35 // pred_check
          %p224 = pneg %p60
        $region42: #{tpu_custom_call.1} parent=35 // pred_check_branch
          %226 = sbr.rel (%p224) target = $region44
        $region43: #{tpu_custom_call.1} parent=35 // pred_region
          %227 = dma.done [#allocation6], 2048
        $region44: #{tpu_custom_call.1} parent=35 // pred_fallthru
          _
        // Predicated region
        $region45: #{tpu_custom_call.1} parent=35 // pred_check
          %p228 = pneg %p81
        $region46: #{tpu_custom_call.1} parent=35 // pred_check_branch
          %230 = sbr.rel (%p228) target = $region48
        $region47: #{tpu_custom_call.1} parent=35 // pred_region
          %231 = dma.done [#allocation6], 8192
        $region48: #{tpu_custom_call.1} parent=35 // pred_fallthru
          _
        %s232 = sand.u32 %s94, 1
        %s233 = scalar_lea.sflag [#allocation9], %s232
        %s234 = sand.u32 %s94, 1
        %s235 = smul.addr %s234, 1024
        %s236 = scalar_lea.vmem [#allocation8], %s235
        // Predicated region
        $region49: #{tpu_custom_call.1} parent=35 // pred_check
          %p237 = pneg %p107
        $region50: #{tpu_custom_call.1} parent=35 // pred_check_branch
          %239 = sbr.rel (%p237) target = $region52
        $region51: #{tpu_custom_call.1} parent=35 // pred_region
          %240 = dma.done %s233, 16384
        $region52: #{tpu_custom_call.1} parent=35 // pred_fallthru
          _
        %p241 = pneg %p39
        %p242 = pneg %p36
        %p243 = pneg %p60
        %p244 = pneg %p57
        %p245 = pneg %p81
        %p246 = pneg %p78
        %s247 = sand.u32 %s94, 1
        %s248 = scalar_lea.sflag [#allocation9], %s247
        %s249 = sand.u32 %s94, 1
        %s250 = smul.addr %s249, 1024
        %s251 = scalar_lea.vmem [#allocation8], %s250
        %p252 = pneg %p107
        %p253 = pneg %p104
        %p254 = pneg %p133
        %p255 = pneg %p130
        %s256 = sand.u32 %s120, 1
        %s257 = scalar_lea.sflag [#allocation4], %s256
        %s258 = sand.u32 %s120, 1
        %s259 = smul.addr %s258, 256
        %s260 = scalar_lea.vmem [#allocation10], %s259
        %s261 = smul.u32 32, %s23
        %s262 = smul.u32 32, %s23
        %v263 = vld [vmem:[#allocation2] sm:$0xff]
        %v264 = vld [vmem:[#allocation2 + $0x8] sm:$0xff]
        %v265 = vld [vmem:[#allocation2 + $0x10] sm:$0xff]
        %v266 = vld [vmem:[#allocation2 + $0x18] sm:$0xff]
        %v267 = vld [vmem:[#allocation2 + $0x20] sm:$0xff]
        %v268 = vld [vmem:[#allocation2 + $0x28] sm:$0xff]
        %v269 = vld [vmem:[#allocation2 + $0x30] sm:$0xff]
        %v270 = vld [vmem:[#allocation2 + $0x38] sm:$0xff]
        %v271 = vld [vmem:[#allocation2 + $0x40] sm:$0xff]
        %v272 = vld [vmem:[#allocation2 + $0x48] sm:$0xff]
        %v273 = vld [vmem:[#allocation2 + $0x50] sm:$0xff]
        %v274 = vld [vmem:[#allocation2 + $0x58] sm:$0xff]
        %v275 = vld [vmem:[#allocation2 + $0x60] sm:$0xff]
        %v276 = vld [vmem:[#allocation2 + $0x68] sm:$0xff]
        %v277 = vld [vmem:[#allocation2 + $0x70] sm:$0xff]
        %v278 = vld [vmem:[#allocation2 + $0x78] sm:$0xff]
        %v279 = vld [vmem:[#allocation2 + $0x80] sm:$0xff]
        %v280 = vld [vmem:[#allocation2 + $0x88] sm:$0xff]
        %v281 = vld [vmem:[#allocation2 + $0x90] sm:$0xff]
        %v282 = vld [vmem:[#allocation2 + $0x98] sm:$0xff]
        %v283 = vld [vmem:[#allocation2 + $0xa0] sm:$0xff]
        %v284 = vld [vmem:[#allocation2 + $0xa8] sm:$0xff]
        %v285 = vld [vmem:[#allocation2 + $0xb0] sm:$0xff]
        %v286 = vld [vmem:[#allocation2 + $0xb8] sm:$0xff]
        %v287 = vld [vmem:[#allocation2 + $0xc0] sm:$0xff]
        %v288 = vld [vmem:[#allocation2 + $0xc8] sm:$0xff]
        %v289 = vld [vmem:[#allocation2 + $0xd0] sm:$0xff]
        %v290 = vld [vmem:[#allocation2 + $0xd8] sm:$0xff]
        %v291 = vld [vmem:[#allocation2 + $0xe0] sm:$0xff]
        %v292 = vld [vmem:[#allocation2 + $0xe8] sm:$0xff]
        %v293 = vld [vmem:[#allocation2 + $0xf0] sm:$0xff]
        %v294 = vld [vmem:[#allocation2 + $0xf8] sm:$0xff]
        %v295 = vld [vmem:[#allocation2 + $0x100] sm:$0xff]
        %v296 = vld [vmem:[#allocation2 + $0x108] sm:$0xff]
        %v297 = vld [vmem:[#allocation2 + $0x110] sm:$0xff]
        %v298 = vld [vmem:[#allocation2 + $0x118] sm:$0xff]
        %v299 = vld [vmem:[#allocation2 + $0x120] sm:$0xff]
        %v300 = vld [vmem:[#allocation2 + $0x128] sm:$0xff]
        %v301 = vld [vmem:[#allocation2 + $0x130] sm:$0xff]
        %v302 = vld [vmem:[#allocation2 + $0x138] sm:$0xff]
        %v303 = vld [vmem:[#allocation2 + $0x140] sm:$0xff]
        %v304 = vld [vmem:[#allocation2 + $0x148] sm:$0xff]
        %v305 = vld [vmem:[#allocation2 + $0x150] sm:$0xff]
        %v306 = vld [vmem:[#allocation2 + $0x158] sm:$0xff]
        %v307 = vld [vmem:[#allocation2 + $0x160] sm:$0xff]
        %v308 = vld [vmem:[#allocation2 + $0x168] sm:$0xff]
        %v309 = vld [vmem:[#allocation2 + $0x170] sm:$0xff]
        %v310 = vld [vmem:[#allocation2 + $0x178] sm:$0xff]
        %v311 = vld [vmem:[#allocation2 + $0x180] sm:$0xff]
        %v312 = vld [vmem:[#allocation2 + $0x188] sm:$0xff]
        %v313 = vld [vmem:[#allocation2 + $0x190] sm:$0xff]
        %v314 = vld [vmem:[#allocation2 + $0x198] sm:$0xff]
        %v315 = vld [vmem:[#allocation2 + $0x1a0] sm:$0xff]
        %v316 = vld [vmem:[#allocation2 + $0x1a8] sm:$0xff]
        %v317 = vld [vmem:[#allocation2 + $0x1b0] sm:$0xff]
        %v318 = vld [vmem:[#allocation2 + $0x1b8] sm:$0xff]
        %v319 = vld [vmem:[#allocation2 + $0x1c0] sm:$0xff]
        %v320 = vld [vmem:[#allocation2 + $0x1c8] sm:$0xff]
        %v321 = vld [vmem:[#allocation2 + $0x1d0] sm:$0xff]
        %v322 = vld [vmem:[#allocation2 + $0x1d8] sm:$0xff]
        %v323 = vld [vmem:[#allocation2 + $0x1e0] sm:$0xff]
        %v324 = vld [vmem:[#allocation2 + $0x1e8] sm:$0xff]
        %v325 = vld [vmem:[#allocation2 + $0x1f0] sm:$0xff]
        %v326 = vld [vmem:[#allocation2 + $0x1f8] sm:$0xff]
        %v327 = vld [vmem:[#allocation5] sm:$0xff]
        %v328 = vld [vmem:[#allocation5 + $0x8] sm:$0xff]
        %v329 = vld [vmem:[#allocation5 + $0x10] sm:$0xff]
        %v330 = vld [vmem:[#allocation5 + $0x18] sm:$0xff]
        %v331 = vld [vmem:[#allocation5 + $0x20] sm:$0xff]
        %v332 = vld [vmem:[#allocation5 + $0x28] sm:$0xff]
        %v333 = vld [vmem:[#allocation5 + $0x30] sm:$0xff]
        %v334 = vld [vmem:[#allocation5 + $0x38] sm:$0xff]
        %v335 = vld [vmem:[#allocation5 + $0x40] sm:$0xff]
        %v336 = vld [vmem:[#allocation5 + $0x48] sm:$0xff]
        %v337 = vld [vmem:[#allocation5 + $0x50] sm:$0xff]
        %v338 = vld [vmem:[#allocation5 + $0x58] sm:$0xff]
        %v339 = vld [vmem:[#allocation5 + $0x60] sm:$0xff]
        %v340 = vld [vmem:[#allocation5 + $0x68] sm:$0xff]
        %v341 = vld [vmem:[#allocation5 + $0x70] sm:$0xff]
        %v342 = vld [vmem:[#allocation5 + $0x78] sm:$0xff]
        %v343 = vld [vmem:[#allocation7] sm:$0xff]
        %v344 = vld [vmem:[#allocation7 + $0x8] sm:$0xff]
        %v345 = vld [vmem:[#allocation7 + $0x10] sm:$0xff]
        %v346 = vld [vmem:[#allocation7 + $0x18] sm:$0xff]
        %v347 = vld [vmem:[#allocation7 + $0x20] sm:$0xff]
        %v348 = vld [vmem:[#allocation7 + $0x28] sm:$0xff]
        %v349 = vld [vmem:[#allocation7 + $0x30] sm:$0xff]
        %v350 = vld [vmem:[#allocation7 + $0x38] sm:$0xff]
        %v351 = vld [vmem:[#allocation7 + $0x40] sm:$0xff]
        %v352 = vld [vmem:[#allocation7 + $0x48] sm:$0xff]
        %v353 = vld [vmem:[#allocation7 + $0x50] sm:$0xff]
        %v354 = vld [vmem:[#allocation7 + $0x58] sm:$0xff]
        %v355 = vld [vmem:[#allocation7 + $0x60] sm:$0xff]
        %v356 = vld [vmem:[#allocation7 + $0x68] sm:$0xff]
        %v357 = vld [vmem:[#allocation7 + $0x70] sm:$0xff]
        %v358 = vld [vmem:[#allocation7 + $0x78] sm:$0xff]
        %v359 = vld [vmem:[#allocation7 + $0x80] sm:$0xff]
        %v360 = vld [vmem:[#allocation7 + $0x88] sm:$0xff]
        %v361 = vld [vmem:[#allocation7 + $0x90] sm:$0xff]
        %v362 = vld [vmem:[#allocation7 + $0x98] sm:$0xff]
        %v363 = vld [vmem:[#allocation7 + $0xa0] sm:$0xff]
        %v364 = vld [vmem:[#allocation7 + $0xa8] sm:$0xff]
        %v365 = vld [vmem:[#allocation7 + $0xb0] sm:$0xff]
        %v366 = vld [vmem:[#allocation7 + $0xb8] sm:$0xff]
        %v367 = vld [vmem:[#allocation7 + $0xc0] sm:$0xff]
        %v368 = vld [vmem:[#allocation7 + $0xc8] sm:$0xff]
        %v369 = vld [vmem:[#allocation7 + $0xd0] sm:$0xff]
        %v370 = vld [vmem:[#allocation7 + $0xd8] sm:$0xff]
        %v371 = vld [vmem:[#allocation7 + $0xe0] sm:$0xff]
        %v372 = vld [vmem:[#allocation7 + $0xe8] sm:$0xff]
        %v373 = vld [vmem:[#allocation7 + $0xf0] sm:$0xff]
        %v374 = vld [vmem:[#allocation7 + $0xf8] sm:$0xff]
        %v375 = vld [vmem:[#allocation7 + $0x100] sm:$0xff]
        %v376 = vld [vmem:[#allocation7 + $0x108] sm:$0xff]
        %v377 = vld [vmem:[#allocation7 + $0x110] sm:$0xff]
        %v378 = vld [vmem:[#allocation7 + $0x118] sm:$0xff]
        %v379 = vld [vmem:[#allocation7 + $0x120] sm:$0xff]
        %v380 = vld [vmem:[#allocation7 + $0x128] sm:$0xff]
        %v381 = vld [vmem:[#allocation7 + $0x130] sm:$0xff]
        %v382 = vld [vmem:[#allocation7 + $0x138] sm:$0xff]
        %v383 = vld [vmem:[#allocation7 + $0x140] sm:$0xff]
        %v384 = vld [vmem:[#allocation7 + $0x148] sm:$0xff]
        %v385 = vld [vmem:[#allocation7 + $0x150] sm:$0xff]
        %v386 = vld [vmem:[#allocation7 + $0x158] sm:$0xff]
        %v387 = vld [vmem:[#allocation7 + $0x160] sm:$0xff]
        %v388 = vld [vmem:[#allocation7 + $0x168] sm:$0xff]
        %v389 = vld [vmem:[#allocation7 + $0x170] sm:$0xff]
        %v390 = vld [vmem:[#allocation7 + $0x178] sm:$0xff]
        %v391 = vld [vmem:[#allocation7 + $0x180] sm:$0xff]
        %v392 = vld [vmem:[#allocation7 + $0x188] sm:$0xff]
        %v393 = vld [vmem:[#allocation7 + $0x190] sm:$0xff]
        %v394 = vld [vmem:[#allocation7 + $0x198] sm:$0xff]
        %v395 = vld [vmem:[#allocation7 + $0x1a0] sm:$0xff]
        %v396 = vld [vmem:[#allocation7 + $0x1a8] sm:$0xff]
        %v397 = vld [vmem:[#allocation7 + $0x1b0] sm:$0xff]
        %v398 = vld [vmem:[#allocation7 + $0x1b8] sm:$0xff]
        %v399 = vld [vmem:[#allocation7 + $0x1c0] sm:$0xff]
        %v400 = vld [vmem:[#allocation7 + $0x1c8] sm:$0xff]
        %v401 = vld [vmem:[#allocation7 + $0x1d0] sm:$0xff]
        %v402 = vld [vmem:[#allocation7 + $0x1d8] sm:$0xff]
        %v403 = vld [vmem:[#allocation7 + $0x1e0] sm:$0xff]
        %v404 = vld [vmem:[#allocation7 + $0x1e8] sm:$0xff]
        %v405 = vld [vmem:[#allocation7 + $0x1f0] sm:$0xff]
        %v406 = vld [vmem:[#allocation7 + $0x1f8] sm:$0xff]
        %407 = vmatprep.subr.mxu0 0.0
        %408 = vmatpush1.msra.mxu0 %v342
        %409 = vmatprep.subr.mxu0 0.0
        %410 = vmatpush1.msra.mxu0 %v341
        %411 = vmatprep.subr.mxu0 0.0
        %412 = vmatpush1.msra.mxu0 %v340
        %413 = vmatprep.subr.mxu0 0.0
        %414 = vmatpush1.msra.mxu0 %v339
        %415 = vmatprep.subr.mxu0 0.0
        %416 = vmatpush1.msra.mxu0 %v338
        %417 = vmatprep.subr.mxu0 0.0
        %418 = vmatpush1.msra.mxu0 %v337
        %419 = vmatprep.subr.mxu0 0.0
        %420 = vmatpush1.msra.mxu0 %v336
        %421 = vmatprep.subr.mxu0 0.0
        %422 = vmatpush1.msra.mxu0 %v335
        %423 = vmatprep.subr.mxu0 0.0
        %424 = vmatpush1.msra.mxu0 %v334
        %425 = vmatprep.subr.mxu0 0.0
        %426 = vmatpush1.msra.mxu0 %v333
        %427 = vmatprep.subr.mxu0 0.0
        %428 = vmatpush1.msra.mxu0 %v332
        %429 = vmatprep.subr.mxu0 0.0
        %430 = vmatpush1.msra.mxu0 %v331
        %431 = vmatprep.subr.mxu0 0.0
        %432 = vmatpush1.msra.mxu0 %v330
        %433 = vmatprep.subr.mxu0 0.0
        %434 = vmatpush1.msra.mxu0 %v329
        %435 = vmatprep.subr.mxu0 0.0
        %436 = vmatpush1.msra.mxu0 %v328
        %437 = vmatprep.subr.mxu0 0.0
        %438 = vmatpush1.msra.mxu0 %v327
        %439 = vmatprep.subr.mxu0 0.0
        %440 = vmatpush2.msra.mxu0 0.0
        %441 = vmatprep.subr.mxu0 0.0
        %442 = vmatpush2.msra.mxu0 0.0
        %443 = vmatprep.subr.mxu0 0.0
        %444 = vmatpush2.msra.mxu0 0.0
        %445 = vmatprep.subr.mxu0 0.0
        %446 = vmatpush2.msra.mxu0 0.0
        %447 = vmatprep.subr.mxu0 0.0
        %448 = vmatpush2.msra.mxu0 0.0
        %449 = vmatprep.subr.mxu0 0.0
        %450 = vmatpush2.msra.mxu0 0.0
        %451 = vmatprep.subr.mxu0 0.0
        %452 = vmatpush2.msra.mxu0 0.0
        %453 = vmatprep.subr.mxu0 0.0
        %454 = vmatpush2.msra.mxu0 0.0
        %455 = vmatprep.subr.mxu0 0.0
        %456 = vmatpush2.msra.mxu0 0.0
        %457 = vmatprep.subr.mxu0 0.0
        %458 = vmatpush2.msra.mxu0 0.0
        %459 = vmatprep.subr.mxu0 0.0
        %460 = vmatpush2.msra.mxu0 0.0
        %461 = vmatprep.subr.mxu0 0.0
        %462 = vmatpush2.msra.mxu0 0.0
        %463 = vmatprep.subr.mxu0 0.0
        %464 = vmatpush2.msra.mxu0 0.0
        %465 = vmatprep.subr.mxu0 0.0
        %466 = vmatpush2.msra.mxu0 0.0
        %467 = vmatprep.subr.mxu0 0.0
        %468 = vmatpush2.msra.mxu0 0.0
        %469 = vmatprep.subr.mxu0 0.0
        %470 = vmatpush2.msra.mxu0 0.0
        %471 = vmatprep.mubr.f32.mxu0 0.0
        %472 = vmatmul.mubr.f32.gmra.mxu0 %v263
        %v473 = vpop.f32.mrf.mxu0
        %v474 = vadd.f32 %v343, %v473
        %v475 = vpop.f32.mrf.mxu0
        %476 = vmatprep.mubr.f32.mxu0 0.0
        %477 = vmatmul.mubr.f32.gmra.mxu0 %v264
        %v478 = vpop.f32.mrf.mxu0
        %v479 = vadd.f32 %v344, %v478
        %v480 = vpop.f32.mrf.mxu0
        %481 = vmatprep.mubr.f32.mxu0 0.0
        %482 = vmatmul.mubr.f32.gmra.mxu0 %v265
        %v483 = vpop.f32.mrf.mxu0
        %v484 = vadd.f32 %v345, %v483
        %v485 = vpop.f32.mrf.mxu0
        %486 = vmatprep.mubr.f32.mxu0 0.0
        %487 = vmatmul.mubr.f32.gmra.mxu0 %v266
        %v488 = vpop.f32.mrf.mxu0
        %v489 = vadd.f32 %v346, %v488
        %v490 = vpop.f32.mrf.mxu0
        %491 = vmatprep.mubr.f32.mxu0 0.0
        %492 = vmatmul.mubr.f32.gmra.mxu0 %v267
        %v493 = vpop.f32.mrf.mxu0
        %v494 = vadd.f32 %v347, %v493
        %v495 = vpop.f32.mrf.mxu0
        %496 = vmatprep.mubr.f32.mxu0 0.0
        %497 = vmatmul.mubr.f32.gmra.mxu0 %v268
        %v498 = vpop.f32.mrf.mxu0
        %v499 = vadd.f32 %v348, %v498
        %v500 = vpop.f32.mrf.mxu0
        %501 = vmatprep.mubr.f32.mxu0 0.0
        %502 = vmatmul.mubr.f32.gmra.mxu0 %v269
        %v503 = vpop.f32.mrf.mxu0
        %v504 = vadd.f32 %v349, %v503
        %v505 = vpop.f32.mrf.mxu0
        %506 = vmatprep.mubr.f32.mxu0 0.0
        %507 = vmatmul.mubr.f32.gmra.mxu0 %v270
        %v508 = vpop.f32.mrf.mxu0
        %v509 = vadd.f32 %v350, %v508
        %v510 = vpop.f32.mrf.mxu0
        %511 = vmatprep.mubr.f32.mxu0 0.0
        %512 = vmatmul.mubr.f32.gmra.mxu0 %v271
        %v513 = vpop.f32.mrf.mxu0
        %v514 = vadd.f32 %v351, %v513
        %v515 = vpop.f32.mrf.mxu0
        %516 = vmatprep.mubr.f32.mxu0 0.0
        %517 = vmatmul.mubr.f32.gmra.mxu0 %v272
        %v518 = vpop.f32.mrf.mxu0
        %v519 = vadd.f32 %v352, %v518
        %v520 = vpop.f32.mrf.mxu0
        %521 = vmatprep.mubr.f32.mxu0 0.0
        %522 = vmatmul.mubr.f32.gmra.mxu0 %v273
        %v523 = vpop.f32.mrf.mxu0
        %v524 = vadd.f32 %v353, %v523
        %v525 = vpop.f32.mrf.mxu0
        %526 = vmatprep.mubr.f32.mxu0 0.0
        %527 = vmatmul.mubr.f32.gmra.mxu0 %v274
        %v528 = vpop.f32.mrf.mxu0
        %v529 = vadd.f32 %v354, %v528
        %v530 = vpop.f32.mrf.mxu0
        %531 = vmatprep.mubr.f32.mxu0 0.0
        %532 = vmatmul.mubr.f32.gmra.mxu0 %v275
        %v533 = vpop.f32.mrf.mxu0
        %v534 = vadd.f32 %v355, %v533
        %v535 = vpop.f32.mrf.mxu0
        %536 = vmatprep.mubr.f32.mxu0 0.0
        %537 = vmatmul.mubr.f32.gmra.mxu0 %v276
        %v538 = vpop.f32.mrf.mxu0
        %v539 = vadd.f32 %v356, %v538
        %v540 = vpop.f32.mrf.mxu0
        %541 = vmatprep.mubr.f32.mxu0 0.0
        %542 = vmatmul.mubr.f32.gmra.mxu0 %v277
        %v543 = vpop.f32.mrf.mxu0
        %v544 = vadd.f32 %v357, %v543
        %v545 = vpop.f32.mrf.mxu0
        %546 = vmatprep.mubr.f32.mxu0 0.0
        %547 = vmatmul.mubr.f32.gmra.mxu0 %v278
        %v548 = vpop.f32.mrf.mxu0
        %v549 = vadd.f32 %v358, %v548
        %v550 = vpop.f32.mrf.mxu0
        %551 = vmatprep.mubr.f32.mxu0 0.0
        %552 = vmatmul.mubr.f32.gmra.mxu0 %v279
        %v553 = vpop.f32.mrf.mxu0
        %v554 = vadd.f32 %v359, %v553
        %v555 = vpop.f32.mrf.mxu0
        %556 = vmatprep.mubr.f32.mxu0 0.0
        %557 = vmatmul.mubr.f32.gmra.mxu0 %v280
        %v558 = vpop.f32.mrf.mxu0
        %v559 = vadd.f32 %v360, %v558
        %v560 = vpop.f32.mrf.mxu0
        %561 = vmatprep.mubr.f32.mxu0 0.0
        %562 = vmatmul.mubr.f32.gmra.mxu0 %v281
        %v563 = vpop.f32.mrf.mxu0
        %v564 = vadd.f32 %v361, %v563
        %v565 = vpop.f32.mrf.mxu0
        %566 = vmatprep.mubr.f32.mxu0 0.0
        %567 = vmatmul.mubr.f32.gmra.mxu0 %v282
        %v568 = vpop.f32.mrf.mxu0
        %v569 = vadd.f32 %v362, %v568
        %v570 = vpop.f32.mrf.mxu0
        %571 = vmatprep.mubr.f32.mxu0 0.0
        %572 = vmatmul.mubr.f32.gmra.mxu0 %v283
        %v573 = vpop.f32.mrf.mxu0
        %v574 = vadd.f32 %v363, %v573
        %v575 = vpop.f32.mrf.mxu0
        %576 = vmatprep.mubr.f32.mxu0 0.0
        %577 = vmatmul.mubr.f32.gmra.mxu0 %v284
        %v578 = vpop.f32.mrf.mxu0
        %v579 = vadd.f32 %v364, %v578
        %v580 = vpop.f32.mrf.mxu0
        %581 = vmatprep.mubr.f32.mxu0 0.0
        %582 = vmatmul.mubr.f32.gmra.mxu0 %v285
        %v583 = vpop.f32.mrf.mxu0
        %v584 = vadd.f32 %v365, %v583
        %v585 = vpop.f32.mrf.mxu0
        %586 = vmatprep.mubr.f32.mxu0 0.0
        %587 = vmatmul.mubr.f32.gmra.mxu0 %v286
        %v588 = vpop.f32.mrf.mxu0
        %v589 = vadd.f32 %v366, %v588
        %v590 = vpop.f32.mrf.mxu0
        %591 = vmatprep.mubr.f32.mxu0 0.0
        %592 = vmatmul.mubr.f32.gmra.mxu0 %v287
        %v593 = vpop.f32.mrf.mxu0
        %v594 = vadd.f32 %v367, %v593
        %v595 = vpop.f32.mrf.mxu0
        %596 = vmatprep.mubr.f32.mxu0 0.0
        %597 = vmatmul.mubr.f32.gmra.mxu0 %v288
        %v598 = vpop.f32.mrf.mxu0
        %v599 = vadd.f32 %v368, %v598
        %v600 = vpop.f32.mrf.mxu0
        %601 = vmatprep.mubr.f32.mxu0 0.0
        %602 = vmatmul.mubr.f32.gmra.mxu0 %v289
        %v603 = vpop.f32.mrf.mxu0
        %v604 = vadd.f32 %v369, %v603
        %v605 = vpop.f32.mrf.mxu0
        %606 = vmatprep.mubr.f32.mxu0 0.0
        %607 = vmatmul.mubr.f32.gmra.mxu0 %v290
        %v608 = vpop.f32.mrf.mxu0
        %v609 = vadd.f32 %v370, %v608
        %v610 = vpop.f32.mrf.mxu0
        %611 = vmatprep.mubr.f32.mxu0 0.0
        %612 = vmatmul.mubr.f32.gmra.mxu0 %v291
        %v613 = vpop.f32.mrf.mxu0
        %v614 = vadd.f32 %v371, %v613
        %v615 = vpop.f32.mrf.mxu0
        %616 = vmatprep.mubr.f32.mxu0 0.0
        %617 = vmatmul.mubr.f32.gmra.mxu0 %v292
        %v618 = vpop.f32.mrf.mxu0
        %v619 = vadd.f32 %v372, %v618
        %v620 = vpop.f32.mrf.mxu0
        %621 = vmatprep.mubr.f32.mxu0 0.0
        %622 = vmatmul.mubr.f32.gmra.mxu0 %v293
        %v623 = vpop.f32.mrf.mxu0
        %v624 = vadd.f32 %v373, %v623
        %v625 = vpop.f32.mrf.mxu0
        %626 = vmatprep.mubr.f32.mxu0 0.0
        %627 = vmatmul.mubr.f32.gmra.mxu0 %v294
        %v628 = vpop.f32.mrf.mxu0
        %v629 = vadd.f32 %v374, %v628
        %v630 = vpop.f32.mrf.mxu0
        %631 = vmatprep.mubr.f32.mxu0 0.0
        %632 = vmatmul.mubr.f32.gmra.mxu0 %v295
        %v633 = vpop.f32.mrf.mxu0
        %v634 = vadd.f32 %v375, %v633
        %v635 = vpop.f32.mrf.mxu0
        %636 = vmatprep.mubr.f32.mxu0 0.0
        %637 = vmatmul.mubr.f32.gmra.mxu0 %v296
        %v638 = vpop.f32.mrf.mxu0
        %v639 = vadd.f32 %v376, %v638
        %v640 = vpop.f32.mrf.mxu0
        %641 = vmatprep.mubr.f32.mxu0 0.0
        %642 = vmatmul.mubr.f32.gmra.mxu0 %v297
        %v643 = vpop.f32.mrf.mxu0
        %v644 = vadd.f32 %v377, %v643
        %v645 = vpop.f32.mrf.mxu0
        %646 = vmatprep.mubr.f32.mxu0 0.0
        %647 = vmatmul.mubr.f32.gmra.mxu0 %v298
        %v648 = vpop.f32.mrf.mxu0
        %v649 = vadd.f32 %v378, %v648
        %v650 = vpop.f32.mrf.mxu0
        %651 = vmatprep.mubr.f32.mxu0 0.0
        %652 = vmatmul.mubr.f32.gmra.mxu0 %v299
        %v653 = vpop.f32.mrf.mxu0
        %v654 = vadd.f32 %v379, %v653
        %v655 = vpop.f32.mrf.mxu0
        %656 = vmatprep.mubr.f32.mxu0 0.0
        %657 = vmatmul.mubr.f32.gmra.mxu0 %v300
        %v658 = vpop.f32.mrf.mxu0
        %v659 = vadd.f32 %v380, %v658
        %v660 = vpop.f32.mrf.mxu0
        %661 = vmatprep.mubr.f32.mxu0 0.0
        %662 = vmatmul.mubr.f32.gmra.mxu0 %v301
        %v663 = vpop.f32.mrf.mxu0
        %v664 = vadd.f32 %v381, %v663
        %v665 = vpop.f32.mrf.mxu0
        %666 = vmatprep.mubr.f32.mxu0 0.0
        %667 = vmatmul.mubr.f32.gmra.mxu0 %v302
        %v668 = vpop.f32.mrf.mxu0
        %v669 = vadd.f32 %v382, %v668
        %v670 = vpop.f32.mrf.mxu0
        %671 = vmatprep.mubr.f32.mxu0 0.0
        %672 = vmatmul.mubr.f32.gmra.mxu0 %v303
        %v673 = vpop.f32.mrf.mxu0
        %v674 = vadd.f32 %v383, %v673
        %v675 = vpop.f32.mrf.mxu0
        %676 = vmatprep.mubr.f32.mxu0 0.0
        %677 = vmatmul.mubr.f32.gmra.mxu0 %v304
        %v678 = vpop.f32.mrf.mxu0
        %v679 = vadd.f32 %v384, %v678
        %v680 = vpop.f32.mrf.mxu0
        %681 = vmatprep.mubr.f32.mxu0 0.0
        %682 = vmatmul.mubr.f32.gmra.mxu0 %v305
        %v683 = vpop.f32.mrf.mxu0
        %v684 = vadd.f32 %v385, %v683
        %v685 = vpop.f32.mrf.mxu0
        %686 = vmatprep.mubr.f32.mxu0 0.0
        %687 = vmatmul.mubr.f32.gmra.mxu0 %v306
        %v688 = vpop.f32.mrf.mxu0
        %v689 = vadd.f32 %v386, %v688
        %v690 = vpop.f32.mrf.mxu0
        %691 = vmatprep.mubr.f32.mxu0 0.0
        %692 = vmatmul.mubr.f32.gmra.mxu0 %v307
        %v693 = vpop.f32.mrf.mxu0
        %v694 = vadd.f32 %v387, %v693
        %v695 = vpop.f32.mrf.mxu0
        %696 = vmatprep.mubr.f32.mxu0 0.0
        %697 = vmatmul.mubr.f32.gmra.mxu0 %v308
        %v698 = vpop.f32.mrf.mxu0
        %v699 = vadd.f32 %v388, %v698
        %v700 = vpop.f32.mrf.mxu0
        %701 = vmatprep.mubr.f32.mxu0 0.0
        %702 = vmatmul.mubr.f32.gmra.mxu0 %v309
        %v703 = vpop.f32.mrf.mxu0
        %v704 = vadd.f32 %v389, %v703
        %v705 = vpop.f32.mrf.mxu0
        %706 = vmatprep.mubr.f32.mxu0 0.0
        %707 = vmatmul.mubr.f32.gmra.mxu0 %v310
        %v708 = vpop.f32.mrf.mxu0
        %v709 = vadd.f32 %v390, %v708
        %v710 = vpop.f32.mrf.mxu0
        %711 = vmatprep.mubr.f32.mxu0 0.0
        %712 = vmatmul.mubr.f32.gmra.mxu0 %v311
        %v713 = vpop.f32.mrf.mxu0
        %v714 = vadd.f32 %v391, %v713
        %v715 = vpop.f32.mrf.mxu0
        %716 = vmatprep.mubr.f32.mxu0 0.0
        %717 = vmatmul.mubr.f32.gmra.mxu0 %v312
        %v718 = vpop.f32.mrf.mxu0
        %v719 = vadd.f32 %v392, %v718
        %v720 = vpop.f32.mrf.mxu0
        %721 = vmatprep.mubr.f32.mxu0 0.0
        %722 = vmatmul.mubr.f32.gmra.mxu0 %v313
        %v723 = vpop.f32.mrf.mxu0
        %v724 = vadd.f32 %v393, %v723
        %v725 = vpop.f32.mrf.mxu0
        %726 = vmatprep.mubr.f32.mxu0 0.0
        %727 = vmatmul.mubr.f32.gmra.mxu0 %v314
        %v728 = vpop.f32.mrf.mxu0
        %v729 = vadd.f32 %v394, %v728
        %v730 = vpop.f32.mrf.mxu0
        %731 = vmatprep.mubr.f32.mxu0 0.0
        %732 = vmatmul.mubr.f32.gmra.mxu0 %v315
        %v733 = vpop.f32.mrf.mxu0
        %v734 = vadd.f32 %v395, %v733
        %v735 = vpop.f32.mrf.mxu0
        %736 = vmatprep.mubr.f32.mxu0 0.0
        %737 = vmatmul.mubr.f32.gmra.mxu0 %v316
        %v738 = vpop.f32.mrf.mxu0
        %v739 = vadd.f32 %v396, %v738
        %v740 = vpop.f32.mrf.mxu0
        %741 = vmatprep.mubr.f32.mxu0 0.0
        %742 = vmatmul.mubr.f32.gmra.mxu0 %v317
        %v743 = vpop.f32.mrf.mxu0
        %v744 = vadd.f32 %v397, %v743
        %v745 = vpop.f32.mrf.mxu0
        %746 = vmatprep.mubr.f32.mxu0 0.0
        %747 = vmatmul.mubr.f32.gmra.mxu0 %v318
        %v748 = vpop.f32.mrf.mxu0
        %v749 = vadd.f32 %v398, %v748
        %v750 = vpop.f32.mrf.mxu0
        %751 = vmatprep.mubr.f32.mxu0 0.0
        %752 = vmatmul.mubr.f32.gmra.mxu0 %v319
        %v753 = vpop.f32.mrf.mxu0
        %v754 = vadd.f32 %v399, %v753
        %v755 = vpop.f32.mrf.mxu0
        %756 = vmatprep.mubr.f32.mxu0 0.0
        %757 = vmatmul.mubr.f32.gmra.mxu0 %v320
        %v758 = vpop.f32.mrf.mxu0
        %v759 = vadd.f32 %v400, %v758
        %v760 = vpop.f32.mrf.mxu0
        %761 = vmatprep.mubr.f32.mxu0 0.0
        %762 = vmatmul.mubr.f32.gmra.mxu0 %v321
        %v763 = vpop.f32.mrf.mxu0
        %v764 = vadd.f32 %v401, %v763
        %v765 = vpop.f32.mrf.mxu0
        %766 = vmatprep.mubr.f32.mxu0 0.0
        %767 = vmatmul.mubr.f32.gmra.mxu0 %v322
        %v768 = vpop.f32.mrf.mxu0
        %v769 = vadd.f32 %v402, %v768
        %v770 = vpop.f32.mrf.mxu0
        %771 = vmatprep.mubr.f32.mxu0 0.0
        %772 = vmatmul.mubr.f32.gmra.mxu0 %v323
        %v773 = vpop.f32.mrf.mxu0
        %v774 = vadd.f32 %v403, %v773
        %v775 = vpop.f32.mrf.mxu0
        %776 = vmatprep.mubr.f32.mxu0 0.0
        %777 = vmatmul.mubr.f32.gmra.mxu0 %v324
        %v778 = vpop.f32.mrf.mxu0
        %v779 = vadd.f32 %v404, %v778
        %v780 = vpop.f32.mrf.mxu0
        %781 = vmatprep.mubr.f32.mxu0 0.0
        %782 = vmatmul.mubr.f32.gmra.mxu0 %v325
        %v783 = vpop.f32.mrf.mxu0
        %v784 = vadd.f32 %v405, %v783
        %v785 = vpop.f32.mrf.mxu0
        %786 = vmatprep.mubr.f32.mxu0 0.0
        %787 = vmatmul.mubr.f32.gmra.mxu0 %v326
        %v788 = vpop.f32.mrf.mxu0
        %v789 = vadd.f32 %v406, %v788
        %v790 = vpop.f32.mrf.mxu0
        %791 = vdwg.mxu0
        %v792 = vld [vmem:[%s236] sm:$0xff]
        %v793 = vld [vmem:[%s236 + $0x8] sm:$0xff]
        %v794 = vld [vmem:[%s236 + $0x10] sm:$0xff]
        %v795 = vld [vmem:[%s236 + $0x18] sm:$0xff]
        %v796 = vld [vmem:[%s236 + $0x20] sm:$0xff]
        %v797 = vld [vmem:[%s236 + $0x28] sm:$0xff]
        %v798 = vld [vmem:[%s236 + $0x30] sm:$0xff]
        %v799 = vld [vmem:[%s236 + $0x38] sm:$0xff]
        %v800 = vld [vmem:[%s236 + $0x40] sm:$0xff]
        %v801 = vld [vmem:[%s236 + $0x48] sm:$0xff]
        %v802 = vld [vmem:[%s236 + $0x50] sm:$0xff]
        %v803 = vld [vmem:[%s236 + $0x58] sm:$0xff]
        %v804 = vld [vmem:[%s236 + $0x60] sm:$0xff]
        %v805 = vld [vmem:[%s236 + $0x68] sm:$0xff]
        %v806 = vld [vmem:[%s236 + $0x70] sm:$0xff]
        %v807 = vld [vmem:[%s236 + $0x78] sm:$0xff]
        %v808 = vld [vmem:[%s236 + $0x80] sm:$0xff]
        %v809 = vld [vmem:[%s236 + $0x88] sm:$0xff]
        %v810 = vld [vmem:[%s236 + $0x90] sm:$0xff]
        %v811 = vld [vmem:[%s236 + $0x98] sm:$0xff]
        %v812 = vld [vmem:[%s236 + $0xa0] sm:$0xff]
        %v813 = vld [vmem:[%s236 + $0xa8] sm:$0xff]
        %v814 = vld [vmem:[%s236 + $0xb0] sm:$0xff]
        %v815 = vld [vmem:[%s236 + $0xb8] sm:$0xff]
        %v816 = vld [vmem:[%s236 + $0xc0] sm:$0xff]
        %v817 = vld [vmem:[%s236 + $0xc8] sm:$0xff]
        %v818 = vld [vmem:[%s236 + $0xd0] sm:$0xff]
        %v819 = vld [vmem:[%s236 + $0xd8] sm:$0xff]
        %v820 = vld [vmem:[%s236 + $0xe0] sm:$0xff]
        %v821 = vld [vmem:[%s236 + $0xe8] sm:$0xff]
        %v822 = vld [vmem:[%s236 + $0xf0] sm:$0xff]
        %v823 = vld [vmem:[%s236 + $0xf8] sm:$0xff]
        %v824 = vld [vmem:[%s236 + $0x100] sm:$0xff]
        %v825 = vld [vmem:[%s236 + $0x108] sm:$0xff]
        %v826 = vld [vmem:[%s236 + $0x110] sm:$0xff]
        %v827 = vld [vmem:[%s236 + $0x118] sm:$0xff]
        %v828 = vld [vmem:[%s236 + $0x120] sm:$0xff]
        %v829 = vld [vmem:[%s236 + $0x128] sm:$0xff]
        %v830 = vld [vmem:[%s236 + $0x130] sm:$0xff]
        %v831 = vld [vmem:[%s236 + $0x138] sm:$0xff]
        %v832 = vld [vmem:[%s236 + $0x140] sm:$0xff]
        %v833 = vld [vmem:[%s236 + $0x148] sm:$0xff]
        %v834 = vld [vmem:[%s236 + $0x150] sm:$0xff]
        %v835 = vld [vmem:[%s236 + $0x158] sm:$0xff]
        %v836 = vld [vmem:[%s236 + $0x160] sm:$0xff]
        %v837 = vld [vmem:[%s236 + $0x168] sm:$0xff]
        %v838 = vld [vmem:[%s236 + $0x170] sm:$0xff]
        %v839 = vld [vmem:[%s236 + $0x178] sm:$0xff]
        %v840 = vld [vmem:[%s236 + $0x180] sm:$0xff]
        %v841 = vld [vmem:[%s236 + $0x188] sm:$0xff]
        %v842 = vld [vmem:[%s236 + $0x190] sm:$0xff]
        %v843 = vld [vmem:[%s236 + $0x198] sm:$0xff]
        %v844 = vld [vmem:[%s236 + $0x1a0] sm:$0xff]
        %v845 = vld [vmem:[%s236 + $0x1a8] sm:$0xff]
        %v846 = vld [vmem:[%s236 + $0x1b0] sm:$0xff]
        %v847 = vld [vmem:[%s236 + $0x1b8] sm:$0xff]
        %v848 = vld [vmem:[%s236 + $0x1c0] sm:$0xff]
        %v849 = vld [vmem:[%s236 + $0x1c8] sm:$0xff]
        %v850 = vld [vmem:[%s236 + $0x1d0] sm:$0xff]
        %v851 = vld [vmem:[%s236 + $0x1d8] sm:$0xff]
        %v852 = vld [vmem:[%s236 + $0x1e0] sm:$0xff]
        %v853 = vld [vmem:[%s236 + $0x1e8] sm:$0xff]
        %v854 = vld [vmem:[%s236 + $0x1f0] sm:$0xff]
        %v855 = vld [vmem:[%s236 + $0x1f8] sm:$0xff]
        %v856 = vld [vmem:[%s236 + $0x200] sm:$0xff]
        %v857 = vld [vmem:[%s236 + $0x208] sm:$0xff]
        %v858 = vld [vmem:[%s236 + $0x210] sm:$0xff]
        %v859 = vld [vmem:[%s236 + $0x218] sm:$0xff]
        %v860 = vld [vmem:[%s236 + $0x220] sm:$0xff]
        %v861 = vld [vmem:[%s236 + $0x228] sm:$0xff]
        %v862 = vld [vmem:[%s236 + $0x230] sm:$0xff]
        %v863 = vld [vmem:[%s236 + $0x238] sm:$0xff]
        %v864 = vld [vmem:[%s236 + $0x240] sm:$0xff]
        %v865 = vld [vmem:[%s236 + $0x248] sm:$0xff]
        %v866 = vld [vmem:[%s236 + $0x250] sm:$0xff]
        %v867 = vld [vmem:[%s236 + $0x258] sm:$0xff]
        %v868 = vld [vmem:[%s236 + $0x260] sm:$0xff]
        %v869 = vld [vmem:[%s236 + $0x268] sm:$0xff]
        %v870 = vld [vmem:[%s236 + $0x270] sm:$0xff]
        %v871 = vld [vmem:[%s236 + $0x278] sm:$0xff]
        %v872 = vld [vmem:[%s236 + $0x280] sm:$0xff]
        %v873 = vld [vmem:[%s236 + $0x288] sm:$0xff]
        %v874 = vld [vmem:[%s236 + $0x290] sm:$0xff]
        %v875 = vld [vmem:[%s236 + $0x298] sm:$0xff]
        %v876 = vld [vmem:[%s236 + $0x2a0] sm:$0xff]
        %v877 = vld [vmem:[%s236 + $0x2a8] sm:$0xff]
        %v878 = vld [vmem:[%s236 + $0x2b0] sm:$0xff]
        %v879 = vld [vmem:[%s236 + $0x2b8] sm:$0xff]
        %v880 = vld [vmem:[%s236 + $0x2c0] sm:$0xff]
        %v881 = vld [vmem:[%s236 + $0x2c8] sm:$0xff]
        %v882 = vld [vmem:[%s236 + $0x2d0] sm:$0xff]
        %v883 = vld [vmem:[%s236 + $0x2d8] sm:$0xff]
        %v884 = vld [vmem:[%s236 + $0x2e0] sm:$0xff]
        %v885 = vld [vmem:[%s236 + $0x2e8] sm:$0xff]
        %v886 = vld [vmem:[%s236 + $0x2f0] sm:$0xff]
        %v887 = vld [vmem:[%s236 + $0x2f8] sm:$0xff]
        %v888 = vld [vmem:[%s236 + $0x300] sm:$0xff]
        %v889 = vld [vmem:[%s236 + $0x308] sm:$0xff]
        %v890 = vld [vmem:[%s236 + $0x310] sm:$0xff]
        %v891 = vld [vmem:[%s236 + $0x318] sm:$0xff]
        %v892 = vld [vmem:[%s236 + $0x320] sm:$0xff]
        %v893 = vld [vmem:[%s236 + $0x328] sm:$0xff]
        %v894 = vld [vmem:[%s236 + $0x330] sm:$0xff]
        %v895 = vld [vmem:[%s236 + $0x338] sm:$0xff]
        %v896 = vld [vmem:[%s236 + $0x340] sm:$0xff]
        %v897 = vld [vmem:[%s236 + $0x348] sm:$0xff]
        %v898 = vld [vmem:[%s236 + $0x350] sm:$0xff]
        %v899 = vld [vmem:[%s236 + $0x358] sm:$0xff]
        %v900 = vld [vmem:[%s236 + $0x360] sm:$0xff]
        %v901 = vld [vmem:[%s236 + $0x368] sm:$0xff]
        %v902 = vld [vmem:[%s236 + $0x370] sm:$0xff]
        %v903 = vld [vmem:[%s236 + $0x378] sm:$0xff]
        %v904 = vld [vmem:[%s236 + $0x380] sm:$0xff]
        %v905 = vld [vmem:[%s236 + $0x388] sm:$0xff]
        %v906 = vld [vmem:[%s236 + $0x390] sm:$0xff]
        %v907 = vld [vmem:[%s236 + $0x398] sm:$0xff]
        %v908 = vld [vmem:[%s236 + $0x3a0] sm:$0xff]
        %v909 = vld [vmem:[%s236 + $0x3a8] sm:$0xff]
        %v910 = vld [vmem:[%s236 + $0x3b0] sm:$0xff]
        %v911 = vld [vmem:[%s236 + $0x3b8] sm:$0xff]
        %v912 = vld [vmem:[%s236 + $0x3c0] sm:$0xff]
        %v913 = vld [vmem:[%s236 + $0x3c8] sm:$0xff]
        %v914 = vld [vmem:[%s236 + $0x3d0] sm:$0xff]
        %v915 = vld [vmem:[%s236 + $0x3d8] sm:$0xff]
        %v916 = vld [vmem:[%s236 + $0x3e0] sm:$0xff]
        %v917 = vld [vmem:[%s236 + $0x3e8] sm:$0xff]
        %v918 = vld [vmem:[%s236 + $0x3f0] sm:$0xff]
        %v919 = vld [vmem:[%s236 + $0x3f8] sm:$0xff]
        %920 = vmatprep.subr.mxu0 0.0
        %921 = vmatpush1.msra.mxu0 %v549
        %922 = vmatprep.subr.mxu0 0.0
        %923 = vmatpush1.msra.mxu0 %v544
        %924 = vmatprep.subr.mxu0 0.0
        %925 = vmatpush1.msra.mxu0 %v539
        %926 = vmatprep.subr.mxu0 0.0
        %927 = vmatpush1.msra.mxu0 %v534
        %928 = vmatprep.subr.mxu0 0.0
        %929 = vmatpush1.msra.mxu0 %v529
        %930 = vmatprep.subr.mxu0 0.0
        %931 = vmatpush1.msra.mxu0 %v524
        %932 = vmatprep.subr.mxu0 0.0
        %933 = vmatpush1.msra.mxu0 %v519
        %934 = vmatprep.subr.mxu0 0.0
        %935 = vmatpush1.msra.mxu0 %v514
        %936 = vmatprep.subr.mxu0 0.0
        %937 = vmatpush1.msra.mxu0 %v509
        %938 = vmatprep.subr.mxu0 0.0
        %939 = vmatpush1.msra.mxu0 %v504
        %940 = vmatprep.subr.mxu0 0.0
        %941 = vmatpush1.msra.mxu0 %v499
        %942 = vmatprep.subr.mxu0 0.0
        %943 = vmatpush1.msra.mxu0 %v494
        %944 = vmatprep.subr.mxu0 0.0
        %945 = vmatpush1.msra.mxu0 %v489
        %946 = vmatprep.subr.mxu0 0.0
        %947 = vmatpush1.msra.mxu0 %v484
        %948 = vmatprep.subr.mxu0 0.0
        %949 = vmatpush1.msra.mxu0 %v479
        %950 = vmatprep.subr.mxu0 0.0
        %951 = vmatpush1.msra.mxu0 %v474
        %952 = vmatprep.subr.mxu0 0.0
        %953 = vmatpush2.msra.mxu0 %v629
        %954 = vmatprep.subr.mxu0 0.0
        %955 = vmatpush2.msra.mxu0 %v624
        %956 = vmatprep.subr.mxu0 0.0
        %957 = vmatpush2.msra.mxu0 %v619
        %958 = vmatprep.subr.mxu0 0.0
        %959 = vmatpush2.msra.mxu0 %v614
        %960 = vmatprep.subr.mxu0 0.0
        %961 = vmatpush2.msra.mxu0 %v609
        %962 = vmatprep.subr.mxu0 0.0
        %963 = vmatpush2.msra.mxu0 %v604
        %964 = vmatprep.subr.mxu0 0.0
        %965 = vmatpush2.msra.mxu0 %v599
        %966 = vmatprep.subr.mxu0 0.0
        %967 = vmatpush2.msra.mxu0 %v594
        %968 = vmatprep.subr.mxu0 0.0
        %969 = vmatpush2.msra.mxu0 %v589
        %970 = vmatprep.subr.mxu0 0.0
        %971 = vmatpush2.msra.mxu0 %v584
        %972 = vmatprep.subr.mxu0 0.0
        %973 = vmatpush2.msra.mxu0 %v579
        %974 = vmatprep.subr.mxu0 0.0
        %975 = vmatpush2.msra.mxu0 %v574
        %976 = vmatprep.subr.mxu0 0.0
        %977 = vmatpush2.msra.mxu0 %v569
        %978 = vmatprep.subr.mxu0 0.0
        %979 = vmatpush2.msra.mxu0 %v564
        %980 = vmatprep.subr.mxu0 0.0
        %981 = vmatpush2.msra.mxu0 %v559
        %982 = vmatprep.subr.mxu0 0.0
        %983 = vmatpush2.msra.mxu0 %v554
        %984 = vmatprep.mubr.f32.mxu0 %v793
        %985 = vmatmul.mubr.f32.gmra.mxu0 %v792
        %v986 = vpop.f32.mrf.mxu0
        %v987 = vadd.f32 0.0, %v986
        %v988 = vpop.f32.mrf.mxu0
        %989 = vmatprep.mubr.f32.mxu0 %v797
        %990 = vmatmul.mubr.f32.gmra.mxu0 %v796
        %v991 = vpop.f32.mrf.mxu0
        %v992 = vadd.f32 0.0, %v991
        %v993 = vpop.f32.mrf.mxu0
        %994 = vmatprep.mubr.f32.mxu0 %v801
        %995 = vmatmul.mubr.f32.gmra.mxu0 %v800
        %v996 = vpop.f32.mrf.mxu0
        %v997 = vadd.f32 0.0, %v996
        %v998 = vpop.f32.mrf.mxu0
        %999 = vmatprep.mubr.f32.mxu0 %v805
        %1000 = vmatmul.mubr.f32.gmra.mxu0 %v804
        %v1001 = vpop.f32.mrf.mxu0
        %v1002 = vadd.f32 0.0, %v1001
        %v1003 = vpop.f32.mrf.mxu0
        %1004 = vmatprep.mubr.f32.mxu0 %v809
        %1005 = vmatmul.mubr.f32.gmra.mxu0 %v808
        %v1006 = vpop.f32.mrf.mxu0
        %v1007 = vadd.f32 0.0, %v1006
        %v1008 = vpop.f32.mrf.mxu0
        %1009 = vmatprep.mubr.f32.mxu0 %v813
        %1010 = vmatmul.mubr.f32.gmra.mxu0 %v812
        %v1011 = vpop.f32.mrf.mxu0
        %v1012 = vadd.f32 0.0, %v1011
        %v1013 = vpop.f32.mrf.mxu0
        %1014 = vmatprep.mubr.f32.mxu0 %v817
        %1015 = vmatmul.mubr.f32.gmra.mxu0 %v816
        %v1016 = vpop.f32.mrf.mxu0
        %v1017 = vadd.f32 0.0, %v1016
        %v1018 = vpop.f32.mrf.mxu0
        %1019 = vmatprep.mubr.f32.mxu0 %v821
        %1020 = vmatmul.mubr.f32.gmra.mxu0 %v820
        %v1021 = vpop.f32.mrf.mxu0
        %v1022 = vadd.f32 0.0, %v1021
        %v1023 = vpop.f32.mrf.mxu0
        %1024 = vmatprep.mubr.f32.mxu0 %v825
        %1025 = vmatmul.mubr.f32.gmra.mxu0 %v824
        %v1026 = vpop.f32.mrf.mxu0
        %v1027 = vadd.f32 0.0, %v1026
        %v1028 = vpop.f32.mrf.mxu0
        %1029 = vmatprep.mubr.f32.mxu0 %v829
        %1030 = vmatmul.mubr.f32.gmra.mxu0 %v828
        %v1031 = vpop.f32.mrf.mxu0
        %v1032 = vadd.f32 0.0, %v1031
        %v1033 = vpop.f32.mrf.mxu0
        %1034 = vmatprep.mubr.f32.mxu0 %v833
        %1035 = vmatmul.mubr.f32.gmra.mxu0 %v832
        %v1036 = vpop.f32.mrf.mxu0
        %v1037 = vadd.f32 0.0, %v1036
        %v1038 = vpop.f32.mrf.mxu0
        %1039 = vmatprep.mubr.f32.mxu0 %v837
        %1040 = vmatmul.mubr.f32.gmra.mxu0 %v836
        %v1041 = vpop.f32.mrf.mxu0
        %v1042 = vadd.f32 0.0, %v1041
        %v1043 = vpop.f32.mrf.mxu0
        %1044 = vmatprep.mubr.f32.mxu0 %v841
        %1045 = vmatmul.mubr.f32.gmra.mxu0 %v840
        %v1046 = vpop.f32.mrf.mxu0
        %v1047 = vadd.f32 0.0, %v1046
        %v1048 = vpop.f32.mrf.mxu0
        %1049 = vmatprep.mubr.f32.mxu0 %v845
        %1050 = vmatmul.mubr.f32.gmra.mxu0 %v844
        %v1051 = vpop.f32.mrf.mxu0
        %v1052 = vadd.f32 0.0, %v1051
        %v1053 = vpop.f32.mrf.mxu0
        %1054 = vmatprep.mubr.f32.mxu0 %v849
        %1055 = vmatmul.mubr.f32.gmra.mxu0 %v848
        %v1056 = vpop.f32.mrf.mxu0
        %v1057 = vadd.f32 0.0, %v1056
        %v1058 = vpop.f32.mrf.mxu0
        %1059 = vmatprep.mubr.f32.mxu0 %v853
        %1060 = vmatmul.mubr.f32.gmra.mxu0 %v852
        %v1061 = vpop.f32.mrf.mxu0
        %v1062 = vadd.f32 0.0, %v1061
        %v1063 = vpop.f32.mrf.mxu0
        %1064 = vmatprep.mubr.f32.mxu0 %v857
        %1065 = vmatmul.mubr.f32.gmra.mxu0 %v856
        %v1066 = vpop.f32.mrf.mxu0
        %v1067 = vadd.f32 0.0, %v1066
        %v1068 = vpop.f32.mrf.mxu0
        %1069 = vmatprep.mubr.f32.mxu0 %v861
        %1070 = vmatmul.mubr.f32.gmra.mxu0 %v860
        %v1071 = vpop.f32.mrf.mxu0
        %v1072 = vadd.f32 0.0, %v1071
        %v1073 = vpop.f32.mrf.mxu0
        %1074 = vmatprep.mubr.f32.mxu0 %v865
        %1075 = vmatmul.mubr.f32.gmra.mxu0 %v864
        %v1076 = vpop.f32.mrf.mxu0
        %v1077 = vadd.f32 0.0, %v1076
        %v1078 = vpop.f32.mrf.mxu0
        %1079 = vmatprep.mubr.f32.mxu0 %v869
        %1080 = vmatmul.mubr.f32.gmra.mxu0 %v868
        %v1081 = vpop.f32.mrf.mxu0
        %v1082 = vadd.f32 0.0, %v1081
        %v1083 = vpop.f32.mrf.mxu0
        %1084 = vmatprep.mubr.f32.mxu0 %v873
        %1085 = vmatmul.mubr.f32.gmra.mxu0 %v872
        %v1086 = vpop.f32.mrf.mxu0
        %v1087 = vadd.f32 0.0, %v1086
        %v1088 = vpop.f32.mrf.mxu0
        %1089 = vmatprep.mubr.f32.mxu0 %v877
        %1090 = vmatmul.mubr.f32.gmra.mxu0 %v876
        %v1091 = vpop.f32.mrf.mxu0
        %v1092 = vadd.f32 0.0, %v1091
        %v1093 = vpop.f32.mrf.mxu0
        %1094 = vmatprep.mubr.f32.mxu0 %v881
        %1095 = vmatmul.mubr.f32.gmra.mxu0 %v880
        %v1096 = vpop.f32.mrf.mxu0
        %v1097 = vadd.f32 0.0, %v1096
        %v1098 = vpop.f32.mrf.mxu0
        %1099 = vmatprep.mubr.f32.mxu0 %v885
        %1100 = vmatmul.mubr.f32.gmra.mxu0 %v884
        %v1101 = vpop.f32.mrf.mxu0
        %v1102 = vadd.f32 0.0, %v1101
        %v1103 = vpop.f32.mrf.mxu0
        %1104 = vmatprep.mubr.f32.mxu0 %v889
        %1105 = vmatmul.mubr.f32.gmra.mxu0 %v888
        %v1106 = vpop.f32.mrf.mxu0
        %v1107 = vadd.f32 0.0, %v1106
        %v1108 = vpop.f32.mrf.mxu0
        %1109 = vmatprep.mubr.f32.mxu0 %v893
        %1110 = vmatmul.mubr.f32.gmra.mxu0 %v892
        %v1111 = vpop.f32.mrf.mxu0
        %v1112 = vadd.f32 0.0, %v1111
        %v1113 = vpop.f32.mrf.mxu0
        %1114 = vmatprep.mubr.f32.mxu0 %v897
        %1115 = vmatmul.mubr.f32.gmra.mxu0 %v896
        %v1116 = vpop.f32.mrf.mxu0
        %v1117 = vadd.f32 0.0, %v1116
        %v1118 = vpop.f32.mrf.mxu0
        %1119 = vmatprep.mubr.f32.mxu0 %v901
        %1120 = vmatmul.mubr.f32.gmra.mxu0 %v900
        %v1121 = vpop.f32.mrf.mxu0
        %v1122 = vadd.f32 0.0, %v1121
        %v1123 = vpop.f32.mrf.mxu0
        %1124 = vmatprep.mubr.f32.mxu0 %v905
        %1125 = vmatmul.mubr.f32.gmra.mxu0 %v904
        %v1126 = vpop.f32.mrf.mxu0
        %v1127 = vadd.f32 0.0, %v1126
        %v1128 = vpop.f32.mrf.mxu0
        %1129 = vmatprep.mubr.f32.mxu0 %v909
        %1130 = vmatmul.mubr.f32.gmra.mxu0 %v908
        %v1131 = vpop.f32.mrf.mxu0
        %v1132 = vadd.f32 0.0, %v1131
        %v1133 = vpop.f32.mrf.mxu0
        %1134 = vmatprep.mubr.f32.mxu0 %v913
        %1135 = vmatmul.mubr.f32.gmra.mxu0 %v912
        %v1136 = vpop.f32.mrf.mxu0
        %v1137 = vadd.f32 0.0, %v1136
        %v1138 = vpop.f32.mrf.mxu0
        %1139 = vmatprep.mubr.f32.mxu0 %v917
        %1140 = vmatmul.mubr.f32.gmra.mxu0 %v916
        %v1141 = vpop.f32.mrf.mxu0
        %v1142 = vadd.f32 0.0, %v1141
        %v1143 = vpop.f32.mrf.mxu0
        %1144 = vdwg.mxu0
        %1145 = vmatprep.subr.mxu0 0.0
        %1146 = vmatpush1.msra.mxu0 %v709
        %1147 = vmatprep.subr.mxu0 0.0
        %1148 = vmatpush1.msra.mxu0 %v704
        %1149 = vmatprep.subr.mxu0 0.0
        %1150 = vmatpush1.msra.mxu0 %v699
        %1151 = vmatprep.subr.mxu0 0.0
        %1152 = vmatpush1.msra.mxu0 %v694
        %1153 = vmatprep.subr.mxu0 0.0
        %1154 = vmatpush1.msra.mxu0 %v689
        %1155 = vmatprep.subr.mxu0 0.0
        %1156 = vmatpush1.msra.mxu0 %v684
        %1157 = vmatprep.subr.mxu0 0.0
        %1158 = vmatpush1.msra.mxu0 %v679
        %1159 = vmatprep.subr.mxu0 0.0
        %1160 = vmatpush1.msra.mxu0 %v674
        %1161 = vmatprep.subr.mxu0 0.0
        %1162 = vmatpush1.msra.mxu0 %v669
        %1163 = vmatprep.subr.mxu0 0.0
        %1164 = vmatpush1.msra.mxu0 %v664
        %1165 = vmatprep.subr.mxu0 0.0
        %1166 = vmatpush1.msra.mxu0 %v659
        %1167 = vmatprep.subr.mxu0 0.0
        %1168 = vmatpush1.msra.mxu0 %v654
        %1169 = vmatprep.subr.mxu0 0.0
        %1170 = vmatpush1.msra.mxu0 %v649
        %1171 = vmatprep.subr.mxu0 0.0
        %1172 = vmatpush1.msra.mxu0 %v644
        %1173 = vmatprep.subr.mxu0 0.0
        %1174 = vmatpush1.msra.mxu0 %v639
        %1175 = vmatprep.subr.mxu0 0.0
        %1176 = vmatpush1.msra.mxu0 %v634
        %1177 = vmatprep.subr.mxu0 0.0
        %1178 = vmatpush2.msra.mxu0 %v789
        %1179 = vmatprep.subr.mxu0 0.0
        %1180 = vmatpush2.msra.mxu0 %v784
        %1181 = vmatprep.subr.mxu0 0.0
        %1182 = vmatpush2.msra.mxu0 %v779
        %1183 = vmatprep.subr.mxu0 0.0
        %1184 = vmatpush2.msra.mxu0 %v774
        %1185 = vmatprep.subr.mxu0 0.0
        %1186 = vmatpush2.msra.mxu0 %v769
        %1187 = vmatprep.subr.mxu0 0.0
        %1188 = vmatpush2.msra.mxu0 %v764
        %1189 = vmatprep.subr.mxu0 0.0
        %1190 = vmatpush2.msra.mxu0 %v759
        %1191 = vmatprep.subr.mxu0 0.0
        %1192 = vmatpush2.msra.mxu0 %v754
        %1193 = vmatprep.subr.mxu0 0.0
        %1194 = vmatpush2.msra.mxu0 %v749
        %1195 = vmatprep.subr.mxu0 0.0
        %1196 = vmatpush2.msra.mxu0 %v744
        %1197 = vmatprep.subr.mxu0 0.0
        %1198 = vmatpush2.msra.mxu0 %v739
        %1199 = vmatprep.subr.mxu0 0.0
        %1200 = vmatpush2.msra.mxu0 %v734
        %1201 = vmatprep.subr.mxu0 0.0
        %1202 = vmatpush2.msra.mxu0 %v729
        %1203 = vmatprep.subr.mxu0 0.0
        %1204 = vmatpush2.msra.mxu0 %v724
        %1205 = vmatprep.subr.mxu0 0.0
        %1206 = vmatpush2.msra.mxu0 %v719
        %1207 = vmatprep.subr.mxu0 0.0
        %1208 = vmatpush2.msra.mxu0 %v714
        %1209 = vmatprep.mubr.f32.mxu0 %v795
        %1210 = vmatmul.mubr.f32.gmra.mxu0 %v794
        %v1211 = vpop.f32.mrf.mxu0
        %v1212 = vadd.f32 %v987, %v1211
        %v1213 = vpop.f32.mrf.mxu0
        %1214 = vmatprep.mubr.f32.mxu0 %v799
        %1215 = vmatmul.mubr.f32.gmra.mxu0 %v798
        %v1216 = vpop.f32.mrf.mxu0
        %v1217 = vadd.f32 %v992, %v1216
        %v1218 = vpop.f32.mrf.mxu0
        %1219 = vmatprep.mubr.f32.mxu0 %v803
        %1220 = vmatmul.mubr.f32.gmra.mxu0 %v802
        %v1221 = vpop.f32.mrf.mxu0
        %v1222 = vadd.f32 %v997, %v1221
        %v1223 = vpop.f32.mrf.mxu0
        %1224 = vmatprep.mubr.f32.mxu0 %v807
        %1225 = vmatmul.mubr.f32.gmra.mxu0 %v806
        %v1226 = vpop.f32.mrf.mxu0
        %v1227 = vadd.f32 %v1002, %v1226
        %v1228 = vpop.f32.mrf.mxu0
        %1229 = vmatprep.mubr.f32.mxu0 %v811
        %1230 = vmatmul.mubr.f32.gmra.mxu0 %v810
        %v1231 = vpop.f32.mrf.mxu0
        %v1232 = vadd.f32 %v1007, %v1231
        %v1233 = vpop.f32.mrf.mxu0
        %1234 = vmatprep.mubr.f32.mxu0 %v815
        %1235 = vmatmul.mubr.f32.gmra.mxu0 %v814
        %v1236 = vpop.f32.mrf.mxu0
        %v1237 = vadd.f32 %v1012, %v1236
        %v1238 = vpop.f32.mrf.mxu0
        %1239 = vmatprep.mubr.f32.mxu0 %v819
        %1240 = vmatmul.mubr.f32.gmra.mxu0 %v818
        %v1241 = vpop.f32.mrf.mxu0
        %v1242 = vadd.f32 %v1017, %v1241
        %v1243 = vpop.f32.mrf.mxu0
        %1244 = vmatprep.mubr.f32.mxu0 %v823
        %1245 = vmatmul.mubr.f32.gmra.mxu0 %v822
        %v1246 = vpop.f32.mrf.mxu0
        %v1247 = vadd.f32 %v1022, %v1246
        %v1248 = vpop.f32.mrf.mxu0
        %1249 = vmatprep.mubr.f32.mxu0 %v827
        %1250 = vmatmul.mubr.f32.gmra.mxu0 %v826
        %v1251 = vpop.f32.mrf.mxu0
        %v1252 = vadd.f32 %v1027, %v1251
        %v1253 = vpop.f32.mrf.mxu0
        %1254 = vmatprep.mubr.f32.mxu0 %v831
        %1255 = vmatmul.mubr.f32.gmra.mxu0 %v830
        %v1256 = vpop.f32.mrf.mxu0
        %v1257 = vadd.f32 %v1032, %v1256
        %v1258 = vpop.f32.mrf.mxu0
        %1259 = vmatprep.mubr.f32.mxu0 %v835
        %1260 = vmatmul.mubr.f32.gmra.mxu0 %v834
        %v1261 = vpop.f32.mrf.mxu0
        %v1262 = vadd.f32 %v1037, %v1261
        %v1263 = vpop.f32.mrf.mxu0
        %1264 = vmatprep.mubr.f32.mxu0 %v839
        %1265 = vmatmul.mubr.f32.gmra.mxu0 %v838
        %v1266 = vpop.f32.mrf.mxu0
        %v1267 = vadd.f32 %v1042, %v1266
        %v1268 = vpop.f32.mrf.mxu0
        %1269 = vmatprep.mubr.f32.mxu0 %v843
        %1270 = vmatmul.mubr.f32.gmra.mxu0 %v842
        %v1271 = vpop.f32.mrf.mxu0
        %v1272 = vadd.f32 %v1047, %v1271
        %v1273 = vpop.f32.mrf.mxu0
        %1274 = vmatprep.mubr.f32.mxu0 %v847
        %1275 = vmatmul.mubr.f32.gmra.mxu0 %v846
        %v1276 = vpop.f32.mrf.mxu0
        %v1277 = vadd.f32 %v1052, %v1276
        %v1278 = vpop.f32.mrf.mxu0
        %1279 = vmatprep.mubr.f32.mxu0 %v851
        %1280 = vmatmul.mubr.f32.gmra.mxu0 %v850
        %v1281 = vpop.f32.mrf.mxu0
        %v1282 = vadd.f32 %v1057, %v1281
        %v1283 = vpop.f32.mrf.mxu0
        %1284 = vmatprep.mubr.f32.mxu0 %v855
        %1285 = vmatmul.mubr.f32.gmra.mxu0 %v854
        %v1286 = vpop.f32.mrf.mxu0
        %v1287 = vadd.f32 %v1062, %v1286
        %v1288 = vpop.f32.mrf.mxu0
        %1289 = vmatprep.mubr.f32.mxu0 %v859
        %1290 = vmatmul.mubr.f32.gmra.mxu0 %v858
        %v1291 = vpop.f32.mrf.mxu0
        %v1292 = vadd.f32 %v1067, %v1291
        %v1293 = vpop.f32.mrf.mxu0
        %1294 = vmatprep.mubr.f32.mxu0 %v863
        %1295 = vmatmul.mubr.f32.gmra.mxu0 %v862
        %v1296 = vpop.f32.mrf.mxu0
        %v1297 = vadd.f32 %v1072, %v1296
        %v1298 = vpop.f32.mrf.mxu0
        %1299 = vmatprep.mubr.f32.mxu0 %v867
        %1300 = vmatmul.mubr.f32.gmra.mxu0 %v866
        %v1301 = vpop.f32.mrf.mxu0
        %v1302 = vadd.f32 %v1077, %v1301
        %v1303 = vpop.f32.mrf.mxu0
        %1304 = vmatprep.mubr.f32.mxu0 %v871
        %1305 = vmatmul.mubr.f32.gmra.mxu0 %v870
        %v1306 = vpop.f32.mrf.mxu0
        %v1307 = vadd.f32 %v1082, %v1306
        %v1308 = vpop.f32.mrf.mxu0
        %1309 = vmatprep.mubr.f32.mxu0 %v875
        %1310 = vmatmul.mubr.f32.gmra.mxu0 %v874
        %v1311 = vpop.f32.mrf.mxu0
        %v1312 = vadd.f32 %v1087, %v1311
        %v1313 = vpop.f32.mrf.mxu0
        %1314 = vmatprep.mubr.f32.mxu0 %v879
        %1315 = vmatmul.mubr.f32.gmra.mxu0 %v878
        %v1316 = vpop.f32.mrf.mxu0
        %v1317 = vadd.f32 %v1092, %v1316
        %v1318 = vpop.f32.mrf.mxu0
        %1319 = vmatprep.mubr.f32.mxu0 %v883
        %1320 = vmatmul.mubr.f32.gmra.mxu0 %v882
        %v1321 = vpop.f32.mrf.mxu0
        %v1322 = vadd.f32 %v1097, %v1321
        %v1323 = vpop.f32.mrf.mxu0
        %1324 = vmatprep.mubr.f32.mxu0 %v887
        %1325 = vmatmul.mubr.f32.gmra.mxu0 %v886
        %v1326 = vpop.f32.mrf.mxu0
        %v1327 = vadd.f32 %v1102, %v1326
        %v1328 = vpop.f32.mrf.mxu0
        %1329 = vmatprep.mubr.f32.mxu0 %v891
        %1330 = vmatmul.mubr.f32.gmra.mxu0 %v890
        %v1331 = vpop.f32.mrf.mxu0
        %v1332 = vadd.f32 %v1107, %v1331
        %v1333 = vpop.f32.mrf.mxu0
        %1334 = vmatprep.mubr.f32.mxu0 %v895
        %1335 = vmatmul.mubr.f32.gmra.mxu0 %v894
        %v1336 = vpop.f32.mrf.mxu0
        %v1337 = vadd.f32 %v1112, %v1336
        %v1338 = vpop.f32.mrf.mxu0
        %1339 = vmatprep.mubr.f32.mxu0 %v899
        %1340 = vmatmul.mubr.f32.gmra.mxu0 %v898
        %v1341 = vpop.f32.mrf.mxu0
        %v1342 = vadd.f32 %v1117, %v1341
        %v1343 = vpop.f32.mrf.mxu0
        %1344 = vmatprep.mubr.f32.mxu0 %v903
        %1345 = vmatmul.mubr.f32.gmra.mxu0 %v902
        %v1346 = vpop.f32.mrf.mxu0
        %v1347 = vadd.f32 %v1122, %v1346
        %v1348 = vpop.f32.mrf.mxu0
        %1349 = vmatprep.mubr.f32.mxu0 %v907
        %1350 = vmatmul.mubr.f32.gmra.mxu0 %v906
        %v1351 = vpop.f32.mrf.mxu0
        %v1352 = vadd.f32 %v1127, %v1351
        %v1353 = vpop.f32.mrf.mxu0
        %1354 = vmatprep.mubr.f32.mxu0 %v911
        %1355 = vmatmul.mubr.f32.gmra.mxu0 %v910
        %v1356 = vpop.f32.mrf.mxu0
        %v1357 = vadd.f32 %v1132, %v1356
        %v1358 = vpop.f32.mrf.mxu0
        %1359 = vmatprep.mubr.f32.mxu0 %v915
        %1360 = vmatmul.mubr.f32.gmra.mxu0 %v914
        %v1361 = vpop.f32.mrf.mxu0
        %v1362 = vadd.f32 %v1137, %v1361
        %v1363 = vpop.f32.mrf.mxu0
        %1364 = vmatprep.mubr.f32.mxu0 %v919
        %1365 = vmatmul.mubr.f32.gmra.mxu0 %v918
        %v1366 = vpop.f32.mrf.mxu0
        %v1367 = vadd.f32 %v1142, %v1366
        %v1368 = vpop.f32.mrf.mxu0
        %1369 = vdwg.mxu0
        %1370 = vst [vmem:[%s260] sm:$0xff] %v1212
        %1371 = vst [vmem:[%s260 + $0x8] sm:$0xff] %v1217
        %1372 = vst [vmem:[%s260 + $0x10] sm:$0xff] %v1222
        %1373 = vst [vmem:[%s260 + $0x18] sm:$0xff] %v1227
        %1374 = vst [vmem:[%s260 + $0x20] sm:$0xff] %v1232
        %1375 = vst [vmem:[%s260 + $0x28] sm:$0xff] %v1237
        %1376 = vst [vmem:[%s260 + $0x30] sm:$0xff] %v1242
        %1377 = vst [vmem:[%s260 + $0x38] sm:$0xff] %v1247
        %1378 = vst [vmem:[%s260 + $0x40] sm:$0xff] %v1252
        %1379 = vst [vmem:[%s260 + $0x48] sm:$0xff] %v1257
        %1380 = vst [vmem:[%s260 + $0x50] sm:$0xff] %v1262
        %1381 = vst [vmem:[%s260 + $0x58] sm:$0xff] %v1267
        %1382 = vst [vmem:[%s260 + $0x60] sm:$0xff] %v1272
        %1383 = vst [vmem:[%s260 + $0x68] sm:$0xff] %v1277
        %1384 = vst [vmem:[%s260 + $0x70] sm:$0xff] %v1282
        %1385 = vst [vmem:[%s260 + $0x78] sm:$0xff] %v1287
        %1386 = vst [vmem:[%s260 + $0x80] sm:$0xff] %v1292
        %1387 = vst [vmem:[%s260 + $0x88] sm:$0xff] %v1297
        %1388 = vst [vmem:[%s260 + $0x90] sm:$0xff] %v1302
        %1389 = vst [vmem:[%s260 + $0x98] sm:$0xff] %v1307
        %1390 = vst [vmem:[%s260 + $0xa0] sm:$0xff] %v1312
        %1391 = vst [vmem:[%s260 + $0xa8] sm:$0xff] %v1317
        %1392 = vst [vmem:[%s260 + $0xb0] sm:$0xff] %v1322
        %1393 = vst [vmem:[%s260 + $0xb8] sm:$0xff] %v1327
        %1394 = vst [vmem:[%s260 + $0xc0] sm:$0xff] %v1332
        %1395 = vst [vmem:[%s260 + $0xc8] sm:$0xff] %v1337
        %1396 = vst [vmem:[%s260 + $0xd0] sm:$0xff] %v1342
        %1397 = vst [vmem:[%s260 + $0xd8] sm:$0xff] %v1347
        %1398 = vst [vmem:[%s260 + $0xe0] sm:$0xff] %v1352
        %1399 = vst [vmem:[%s260 + $0xe8] sm:$0xff] %v1357
        %1400 = vst [vmem:[%s260 + $0xf0] sm:$0xff] %v1362
        %1401 = vst [vmem:[%s260 + $0xf8] sm:$0xff] %v1367
        %s1402 = sand.u32 %s120, 1
        %s1403 = scalar_lea.sflag [#allocation4], %s1402
        %s1404 = sand.u32 %s120, 1
        %s1405 = smul.addr %s1404, 256
        %s1406 = scalar_lea.vmem [#allocation10], %s1405
        // Predicated region
        $region53: #{tpu_custom_call.1} parent=35 // pred_check
          %p1407 = pneg %p130
        $region54: #{tpu_custom_call.1} parent=35 // pred_check_branch
          %1409 = sbr.rel (%p1407) target = $region56
        $region55: #{tpu_custom_call.1} parent=35 // pred_region
          %s1410 = smul.u32 32, %s23
          %s1412 = ssub.s32 4096, 4096
          %1413 = vsyncadd %s1403, %s1412
          %s1414 = smul.addr %s1410, 128
          %s1415 = scalar_lea.hbm %s4, %s1414
          %s1416 = sshll.u32 %s1406, 4
          %s1417 = int_to_ptr.vmem [resolvable:$true] %s1416
          %1422 = dma.vmem_to_hbm [thread:$0]  %s1417, 4096, %s1415, %s1403, 128, 128, 8
        $region56: #{tpu_custom_call.1} parent=35 // pred_fallthru
          _
      $region36: #{tpu_custom_call.1} parent=5 // pred_fallthru
        _
      %p1423 = scmp.le.s32.totalorder 2, %s18
      // Predicated region
      $region57: #{tpu_custom_call.1} parent=5 // pred_check
        %p1424 = pneg %p1423
      $region58: #{tpu_custom_call.1} parent=5 // pred_check_branch
        %1426 = sbr.rel (%p1424) target = $region60
      $region59: #{tpu_custom_call.1} parent=5 // pred_region
        %s1427 = ssub.s32 %s18, 2
        // Predicated region
        $region61: #{tpu_custom_call.1} parent=59 // pred_check
          %p1428 = pneg %p136
        $region62: #{tpu_custom_call.1} parent=59 // pred_check_branch
          %1430 = sbr.rel (%p1428) target = $region64
        $region63: #{tpu_custom_call.1} parent=59 // pred_region
          %s1431 = sand.u32 %s121, 1
          %s1432 = scalar_lea.sflag [#allocation4], %s1431
          %s1433 = sand.u32 %s121, 1
          %s1434 = smul.addr %s1433, 256
          %s1435 = scalar_lea.vmem [#allocation10], %s1434
          %1436 = dma.done %s1432, 4096
        $region64: #{tpu_custom_call.1} parent=59 // pred_fallthru
          _
      $region60: #{tpu_custom_call.1} parent=5 // pred_fallthru
        _
    $region6: #{tpu_custom_call.1} parent=1 // loop_footer
      %s22 = sadd.s32 1, %s18
    $region7: #{tpu_custom_call.1} parent=1 // loop_footer_branch
      %17 = sbr.rel target = $region3
    $region8: #{tpu_custom_call.1} parent=1 // loop_exit
      _
    %1437 = vsyncpa [#allocation3], 1
    %s1438 = scalar_lea.sflag [#allocation3], 1
    %1439 = vsyncpa %s1438, 1
    %1440 = vsyncpa [#allocation6], 1
    %1441 = vsyncpa [#allocation9], 1
    %s1442 = scalar_lea.sflag [#allocation9], 1
    %1443 = vsyncpa %s1442, 1
    %1444 = vsyncpa [#allocation4], 1
    %s1445 = scalar_lea.sflag [#allocation4], 1
    %1446 = vsyncpa %s1445, 1

</llo_original>
